<compile_context>
chip_gen: v5e
topology: v5e:2x2
jax: 0.10.0
libtpu: 0.0.40
codegen_flags: <defaults>
</compile_context>

<pallas_src>
import math
import jax
import jax.numpy as jnp
from jax import lax
from jax.experimental import pallas as pl
from jax.experimental.pallas import tpu as pltpu


def _ssa_kernel(x_ref, gmat_ref, gamma_ref, beta_ref,
                wqkv_ref, bqkv_ref, wp_ref, bp_ref, o_ref):
    # x_ref: (1, C, N) f32 block for one batch element; channels on sublanes,
    # spatial positions on lanes (lane-dense for N a multiple of 128).
    x = x_ref[0]                                             # (C, N) f32
    c, n = x.shape
    bf16 = jnp.bfloat16
    f32 = jnp.float32

    # ---- GroupNorm(num_groups=32, eps=1e-6, affine=True), two-pass, f32 stats ----
    # gmat[c1, c2] = 1/(N*group_size) iff c1, c2 are in the same group.
    s = jnp.sum(x, axis=1, keepdims=True)                    # (C, 1) per-channel sum
    mean = jnp.dot(gmat_ref[...], s,
                   preferred_element_type=f32)               # (C, 1) per-group mean
    d = x - mean                                             # (C, N)
    ssd = jnp.sum(d * d, axis=1, keepdims=True)              # (C, 1) sum of sq deviations
    var = jnp.dot(gmat_ref[...], ssd,
                  preferred_element_type=f32)                # (C, 1) per-group variance
    inv = lax.rsqrt(var + 1e-6)
    xn = d * (inv * gamma_ref[...]) + beta_ref[...]          # (C, N) f32

    # ---- fused 1x1-conv q/k/v projection: one (3C, C) x (C, N) bf16 MXU matmul ----
    xn_b = xn.astype(bf16)
    qkv = jnp.dot(wqkv_ref[...], xn_b,
                  preferred_element_type=f32) + bqkv_ref[...]   # (3C, N) f32
    # Static, sublane-aligned 128-row slices — whole-vreg, no relayout.
    # 1/sqrt(C) is already folded into the Wq/bq rows of wqkv/bqkv.
    q = qkv[0 * c:1 * c, :].astype(bf16)                     # (C, N)
    k = qkv[1 * c:2 * c, :].astype(bf16)                     # (C, N)
    v = qkv[2 * c:3 * c, :].astype(bf16)                     # (C, N)

    # ---- attention over spatial positions (softmax along the key axis, f32 stats) ----
    logits = lax.dot_general(q, k, (((0,), (0,)), ((), ())),
                             preferred_element_type=f32)     # (Nq, Nk) f32, pre-scaled
    m = jnp.max(logits, axis=-1, keepdims=True)
    p = jnp.exp(logits - m)
    denom = jnp.sum(p, axis=-1, keepdims=True)
    attn = (p * pl.reciprocal(denom, approx=True)).astype(bf16)   # (Nq, Nk) bf16

    # h[c, i] = sum_j v[c, j] * attn[i, j]
    h = lax.dot_general(v, attn, (((1,), (1,)), ((), ())),
                        preferred_element_type=f32)          # (C, Nq) f32

    # ---- output projection + residual ----
    o = jnp.dot(wp_ref[...], h.astype(bf16),
                preferred_element_type=f32) + bp_ref[...]    # (C, N) f32
    o_ref[0] = (x + o).astype(o_ref.dtype)


def spatial_self_attention(x, gamma, beta, wq, bq, wk, bk, wv, bv, wp, bp,
                           *, num_groups=32):
    """x: (B, C, H, W); conv weights are (C_out, C_in) (1x1 kernels squeezed)."""
    B, C, H, W = x.shape
    N = H * W
    assert C % num_groups == 0, "GroupNorm(32) requires C % num_groups == 0"
    f32 = jnp.float32
    bf16 = jnp.bfloat16

    # Free metadata reshape: NCHW -> (B, C, N).  No HBM re-layout.
    x_cn = x.reshape(B, C, N).astype(f32)

    gs = C // num_groups
    gid = jnp.arange(C) // gs
    gmat = (gid[:, None] == gid[None, :]).astype(f32) / f32(N * gs)   # (C, C)

    # Fused q/k/v weight with the attention scale folded into the q rows.
    scale = f32(C ** -0.5)
    wqkv = jnp.concatenate(
        [wq.astype(f32) * scale, wk.astype(f32), wv.astype(f32)], axis=0
    ).astype(bf16)                                                     # (3C, C) bf16
    bqkv = jnp.concatenate(
        [bq.astype(f32) * scale, bk.astype(f32), bv.astype(f32)], axis=0
    ).reshape(3 * C, 1)                                                # (3C, 1) f32

    def col(v):
        return v.reshape(C, 1).astype(f32)

    args = (x_cn, gmat, col(gamma), col(beta),
            wqkv, bqkv, wp.astype(bf16), col(bp))

    def resident(shape):
        # Constant index_map: operand stays resident across grid steps.
        return pl.BlockSpec(shape, lambda b: (0, 0))

    out_cn = pl.pallas_call(
        _ssa_kernel,
        out_shape=jax.ShapeDtypeStruct((B, C, N), x.dtype),
        grid_spec=pltpu.PrefetchScalarGridSpec(
            num_scalar_prefetch=0,
            grid=(B,),
            in_specs=[
                pl.BlockSpec((1, C, N), lambda b: (b, 0, 0)),   # x (one batch element)
                resident((C, C)),                               # group-averaging matrix
                resident((C, 1)), resident((C, 1)),             # gamma, beta
                resident((3 * C, C)), resident((3 * C, 1)),     # fused Wqkv (bf16), bqkv
                resident((C, C)), resident((C, 1)),             # Wp (bf16), bp
            ],
            out_specs=pl.BlockSpec((1, C, N), lambda b: (b, 0, 0)),
        ),
        compiler_params=pltpu.CompilerParams(
            dimension_semantics=("parallel",)),
    )(*args)

    # Free metadata reshape back to NCHW.
    return out_cn.reshape(B, C, H, W).astype(x.dtype)


if __name__ == "__main__":
    # Small shapes consistent with the module; GroupNorm(32) forces C % 32 == 0,
    # and C = 128 keeps both MXU operand dims fully utilized.
    B, C, H, W = 2, 128, 16, 16
    key = jax.random.PRNGKey(0)
    ks = jax.random.split(key, 11)

    x = jax.random.normal(ks[0], (B, C, H, W), dtype=jnp.float32)

    bound = 1.0 / math.sqrt(C)  # torch Conv2d default init bound (fan_in = C*1*1)

    def conv_w(k):
        return jax.random.uniform(k, (C, C), jnp.float32, -bound, bound)

    def conv_b(k):
        return jax.random.uniform(k, (C,), jnp.float32, -bound, bound)

    gamma = 1.0 + 0.05 * jax.random.normal(ks[1], (C,), jnp.float32)
    beta = 0.05 * jax.random.normal(ks[2], (C,), jnp.float32)
    wq, bq = conv_w(ks[3]), conv_b(ks[4])
    wk, bk = conv_w(ks[5]), conv_b(ks[6])
    wv, bv = conv_w(ks[7]), conv_b(ks[8])
    wp, bp = conv_w(ks[9]), conv_b(ks[10])

    out = spatial_self_attention(x, gamma, beta, wq, bq, wk, bk, wv, bv, wp, bp)
    jax.block_until_ready(out)

    # ---- pure-JAX reference mirroring the PyTorch forward ----
    def reference(x):
        G = 32
        hp = jax.lax.Precision.HIGHEST
        xg = x.reshape(B, G, C // G, H, W)
        mean = xg.mean(axis=(2, 3, 4), keepdims=True)
        var = xg.var(axis=(2, 3, 4), keepdims=True)
        hn = ((xg - mean) / jnp.sqrt(var + 1e-6)).reshape(B, C, H, W)
        hn = hn * gamma[None, :, None, None] + beta[None, :, None, None]

        def conv1x1(t, w, b):
            return jnp.einsum('bchw,oc->bohw', t, w, precision=hp) + b[None, :, None, None]

        q = conv1x1(hn, wq, bq)
        k = conv1x1(hn, wk, bk)
        v = conv1x1(hn, wv, bv)
        Nn = H * W
        qf = q.reshape(B, C, Nn).transpose(0, 2, 1)                       # (B, N, C)
        kf = k.reshape(B, C, Nn)                                          # (B, C, N)
        w_ = jnp.einsum('bic,bcj->bij', qf, kf, precision=hp) * (C ** -0.5)
        w_ = jax.nn.softmax(w_, axis=2)
        vf = v.reshape(B, C, Nn)
        ho = jnp.einsum('bcj,bij->bci', vf, w_, precision=hp).reshape(B, C, H, W)
        return x + conv1x1(ho, wp, bp)

    ref = reference(x)
    assert out.shape == x.shape
    assert jnp.allclose(out, ref, atol=5e-2, rtol=5e-2), \
        float(jnp.max(jnp.abs(out - ref)))
    print("KERNEL_OK")
</pallas_src>

<mosaic_0001>
module attributes {stable_mosaic.version = 11 : i64} {
  func.func @_ssa_kernel(%arg0: i32, %arg1: memref<1x128x256xf32, #tpu.memory_space<vmem>>, %arg2: memref<128x128xf32, #tpu.memory_space<vmem>>, %arg3: memref<128x1xf32, #tpu.memory_space<vmem>>, %arg4: memref<128x1xf32, #tpu.memory_space<vmem>>, %arg5: memref<384x128xbf16, #tpu.memory_space<vmem>>, %arg6: memref<384x1xf32, #tpu.memory_space<vmem>>, %arg7: memref<128x128xbf16, #tpu.memory_space<vmem>>, %arg8: memref<128x1xf32, #tpu.memory_space<vmem>>, %arg9: memref<1x128x256xf32, #tpu.memory_space<vmem>>) attributes {dimension_semantics = [#tpu.dimension_semantics<parallel>], iteration_bounds = array<i64: 2>, scalar_prefetch = 0 : i64, scratch_operands = 0 : i64, tpu.core_type = #tpu.core_type<tc>, window_params = [{transform_indices = @transform_0, window_bounds = array<i64: 1, 128, 256>}, {pipeline_mode = #tpu.pipeline_mode<synchronous>, transform_indices = @transform_1, window_bounds = array<i64: 128, 128>}, {pipeline_mode = #tpu.pipeline_mode<synchronous>, transform_indices = @transform_2, window_bounds = array<i64: 128, 1>}, {pipeline_mode = #tpu.pipeline_mode<synchronous>, transform_indices = @transform_3, window_bounds = array<i64: 128, 1>}, {pipeline_mode = #tpu.pipeline_mode<synchronous>, transform_indices = @transform_4, window_bounds = array<i64: 384, 128>}, {pipeline_mode = #tpu.pipeline_mode<synchronous>, transform_indices = @transform_5, window_bounds = array<i64: 384, 1>}, {pipeline_mode = #tpu.pipeline_mode<synchronous>, transform_indices = @transform_6, window_bounds = array<i64: 128, 128>}, {pipeline_mode = #tpu.pipeline_mode<synchronous>, transform_indices = @transform_7, window_bounds = array<i64: 128, 1>}, {transform_indices = @transform_8, window_bounds = array<i64: 1, 128, 256>}]} {
    %c0 = arith.constant 0 : index
    %c0_0 = arith.constant 0 : index
    %c0_1 = arith.constant 0 : index
    %0 = vector.load %arg1[%c0, %c0_0, %c0_1] : memref<1x128x256xf32, #tpu.memory_space<vmem>>, vector<1x128x256xf32>
    %1 = vector.shape_cast %0 : vector<1x128x256xf32> to vector<128x256xf32>
    %cst = arith.constant dense<0.000000e+00> : vector<128xf32>
    %2 = vector.multi_reduction <add>, %1, %cst [1] : vector<128x256xf32> to vector<128xf32>
    %3 = vector.shape_cast %2 : vector<128xf32> to vector<128x1xf32>
    %c0_2 = arith.constant 0 : index
    %c0_3 = arith.constant 0 : index
    %4 = vector.load %arg2[%c0_2, %c0_3] : memref<128x128xf32, #tpu.memory_space<vmem>>, vector<128x128xf32>
    %cst_4 = arith.constant dense<0.000000e+00> : vector<128x1xf32>
    %5 = tpu.matmul %4, %3, %cst_4 {dimension_numbers = #tpu.dot_dimension_numbers<[1], [0], [0], [1], [0, 0, 1, 1], [], []>} : vector<128x128xf32>, vector<128x1xf32>, vector<128x1xf32> -> vector<128x1xf32>
    %6 = vector.broadcast %5 : vector<128x1xf32> to vector<128x256xf32>
    %7 = arith.subf %1, %6 : vector<128x256xf32>
    %8 = arith.mulf %7, %7 : vector<128x256xf32>
    %cst_5 = arith.constant dense<0.000000e+00> : vector<128xf32>
    %9 = vector.multi_reduction <add>, %8, %cst_5 [1] : vector<128x256xf32> to vector<128xf32>
    %10 = vector.shape_cast %9 : vector<128xf32> to vector<128x1xf32>
    %c0_6 = arith.constant 0 : index
    %c0_7 = arith.constant 0 : index
    %11 = vector.load %arg2[%c0_6, %c0_7] : memref<128x128xf32, #tpu.memory_space<vmem>>, vector<128x128xf32>
    %cst_8 = arith.constant dense<0.000000e+00> : vector<128x1xf32>
    %12 = tpu.matmul %11, %10, %cst_8 {dimension_numbers = #tpu.dot_dimension_numbers<[1], [0], [0], [1], [0, 0, 1, 1], [], []>} : vector<128x128xf32>, vector<128x1xf32>, vector<128x1xf32> -> vector<128x1xf32>
    %cst_9 = arith.constant 9.99999997E-7 : f32
    %13 = vector.broadcast %cst_9 : f32 to vector<128x1xf32>
    %14 = arith.addf %12, %13 : vector<128x1xf32>
    %15 = math.rsqrt %14 : vector<128x1xf32>
    %c0_10 = arith.constant 0 : index
    %c0_11 = arith.constant 0 : index
    %16 = vector.load %arg3[%c0_10, %c0_11] : memref<128x1xf32, #tpu.memory_space<vmem>>, vector<128x1xf32>
    %17 = arith.mulf %15, %16 : vector<128x1xf32>
    %18 = vector.broadcast %17 : vector<128x1xf32> to vector<128x256xf32>
    %19 = arith.mulf %7, %18 : vector<128x256xf32>
    %c0_12 = arith.constant 0 : index
    %c0_13 = arith.constant 0 : index
    %20 = vector.load %arg4[%c0_12, %c0_13] : memref<128x1xf32, #tpu.memory_space<vmem>>, vector<128x1xf32>
    %21 = vector.broadcast %20 : vector<128x1xf32> to vector<128x256xf32>
    %22 = arith.addf %19, %21 : vector<128x256xf32>
    %23 = arith.truncf %22 : vector<128x256xf32> to vector<128x256xbf16>
    %c0_14 = arith.constant 0 : index
    %c0_15 = arith.constant 0 : index
    %24 = vector.load %arg5[%c0_14, %c0_15] : memref<384x128xbf16, #tpu.memory_space<vmem>>, vector<384x128xbf16>
    %cst_16 = arith.constant dense<0.000000e+00> : vector<384x256xf32>
    %25 = tpu.matmul %24, %23, %cst_16 {dimension_numbers = #tpu.dot_dimension_numbers<[1], [0], [0], [1], [0, 0, 1, 1], [], []>} : vector<384x128xbf16>, vector<128x256xbf16>, vector<384x256xf32> -> vector<384x256xf32>
    %c0_17 = arith.constant 0 : index
    %c0_18 = arith.constant 0 : index
    %26 = vector.load %arg6[%c0_17, %c0_18] : memref<384x1xf32, #tpu.memory_space<vmem>>, vector<384x1xf32>
    %27 = vector.broadcast %26 : vector<384x1xf32> to vector<384x256xf32>
    %28 = arith.addf %25, %27 : vector<384x256xf32>
    %29 = vector.extract_strided_slice %28 {offsets = [0, 0], sizes = [128, 256], strides = [1, 1]} : vector<384x256xf32> to vector<128x256xf32>
    %30 = arith.truncf %29 : vector<128x256xf32> to vector<128x256xbf16>
    %31 = vector.extract_strided_slice %28 {offsets = [128, 0], sizes = [128, 256], strides = [1, 1]} : vector<384x256xf32> to vector<128x256xf32>
    %32 = arith.truncf %31 : vector<128x256xf32> to vector<128x256xbf16>
    %33 = vector.extract_strided_slice %28 {offsets = [256, 0], sizes = [128, 256], strides = [1, 1]} : vector<384x256xf32> to vector<128x256xf32>
    %34 = arith.truncf %33 : vector<128x256xf32> to vector<128x256xbf16>
    %cst_19 = arith.constant dense<0.000000e+00> : vector<256x256xf32>
    %35 = tpu.matmul %30, %32, %cst_19 {dimension_numbers = #tpu.dot_dimension_numbers<[0], [0], [1], [1], [0, 1, 1, 1], [], []>} : vector<128x256xbf16>, vector<128x256xbf16>, vector<256x256xf32> -> vector<256x256xf32>
    %cst_20 = arith.constant dense<0xFF800000> : vector<256xf32>
    %36 = vector.multi_reduction <maximumf>, %35, %cst_20 [1] : vector<256x256xf32> to vector<256xf32>
    %37 = vector.shape_cast %36 : vector<256xf32> to vector<256x1xf32>
    %38 = vector.broadcast %37 : vector<256x1xf32> to vector<256x256xf32>
    %39 = arith.subf %35, %38 : vector<256x256xf32>
    %40 = math.exp %39 : vector<256x256xf32>
    %cst_21 = arith.constant dense<0.000000e+00> : vector<256xf32>
    %41 = vector.multi_reduction <add>, %40, %cst_21 [1] : vector<256x256xf32> to vector<256xf32>
    %42 = vector.shape_cast %41 : vector<256xf32> to vector<256x1xf32>
    %43 = tpu.reciprocal %42 {approx = true} : vector<256x1xf32> -> vector<256x1xf32>
    %44 = vector.broadcast %43 : vector<256x1xf32> to vector<256x256xf32>
    %45 = arith.mulf %40, %44 : vector<256x256xf32>
    %46 = arith.truncf %45 : vector<256x256xf32> to vector<256x256xbf16>
    %cst_22 = arith.constant dense<0.000000e+00> : vector<128x256xf32>
    %47 = tpu.matmul %34, %46, %cst_22 {dimension_numbers = #tpu.dot_dimension_numbers<[1], [1], [0], [0], [0, 0, 1, 0], [], []>} : vector<128x256xbf16>, vector<256x256xbf16>, vector<128x256xf32> -> vector<128x256xf32>
    %c0_23 = arith.constant 0 : index
    %c0_24 = arith.constant 0 : index
    %48 = vector.load %arg7[%c0_23, %c0_24] : memref<128x128xbf16, #tpu.memory_space<vmem>>, vector<128x128xbf16>
    %49 = arith.truncf %47 : vector<128x256xf32> to vector<128x256xbf16>
    %cst_25 = arith.constant dense<0.000000e+00> : vector<128x256xf32>
    %50 = tpu.matmul %48, %49, %cst_25 {dimension_numbers = #tpu.dot_dimension_numbers<[1], [0], [0], [1], [0, 0, 1, 1], [], []>} : vector<128x128xbf16>, vector<128x256xbf16>, vector<128x256xf32> -> vector<128x256xf32>
    %c0_26 = arith.constant 0 : index
    %c0_27 = arith.constant 0 : index
    %51 = vector.load %arg8[%c0_26, %c0_27] : memref<128x1xf32, #tpu.memory_space<vmem>>, vector<128x1xf32>
    %52 = vector.broadcast %51 : vector<128x1xf32> to vector<128x256xf32>
    %53 = arith.addf %50, %52 : vector<128x256xf32>
    %54 = arith.addf %1, %53 : vector<128x256xf32>
    %c0_28 = arith.constant 0 : index
    %c0_29 = arith.constant 0 : index
    %c0_30 = arith.constant 0 : index
    %55 = vector.load %arg9[%c0_28, %c0_29, %c0_30] : memref<1x128x256xf32, #tpu.memory_space<vmem>>, vector<1x128x256xf32>
    %56 = vector.shape_cast %55 : vector<1x128x256xf32> to vector<128x256xf32>
    %57 = vector.shape_cast %54 : vector<128x256xf32> to vector<1x128x256xf32>
    tpu.vector_store %arg9[%c0_28, %c0_29, %c0_30], %57 {strides = array<i32>} : memref<1x128x256xf32, #tpu.memory_space<vmem>>, vector<1x128x256xf32>,
    return
  }
  func.func @transform_0(%arg0: i32) -> (i32, i32, i32) {
    %c0_i32 = arith.constant 0 : i32
    %c0_i32_0 = arith.constant 0 : i32
    %c0_i32_1 = arith.constant 0 : i32
    return %arg0, %c0_i32, %c0_i32_0 : i32, i32, i32
  }
  func.func @transform_1(%arg0: i32) -> (i32, i32) {
    %c0_i32 = arith.constant 0 : i32
    %c0_i32_0 = arith.constant 0 : i32
    %c0_i32_1 = arith.constant 0 : i32
    return %c0_i32, %c0_i32_0 : i32, i32
  }
  func.func @transform_2(%arg0: i32) -> (i32, i32) {
    %c0_i32 = arith.constant 0 : i32
    %c0_i32_0 = arith.constant 0 : i32
    %c0_i32_1 = arith.constant 0 : i32
    return %c0_i32, %c0_i32_0 : i32, i32
  }
  func.func @transform_3(%arg0: i32) -> (i32, i32) {
    %c0_i32 = arith.constant 0 : i32
    %c0_i32_0 = arith.constant 0 : i32
    %c0_i32_1 = arith.constant 0 : i32
    return %c0_i32, %c0_i32_0 : i32, i32
  }
  func.func @transform_4(%arg0: i32) -> (i32, i32) {
    %c0_i32 = arith.constant 0 : i32
    %c0_i32_0 = arith.constant 0 : i32
    %c0_i32_1 = arith.constant 0 : i32
    return %c0_i32, %c0_i32_0 : i32, i32
  }
  func.func @transform_5(%arg0: i32) -> (i32, i32) {
    %c0_i32 = arith.constant 0 : i32
    %c0_i32_0 = arith.constant 0 : i32
    %c0_i32_1 = arith.constant 0 : i32
    return %c0_i32, %c0_i32_0 : i32, i32
  }
  func.func @transform_6(%arg0: i32) -> (i32, i32) {
    %c0_i32 = arith.constant 0 : i32
    %c0_i32_0 = arith.constant 0 : i32
    %c0_i32_1 = arith.constant 0 : i32
    return %c0_i32, %c0_i32_0 : i32, i32
  }
  func.func @transform_7(%arg0: i32) -> (i32, i32) {
    %c0_i32 = arith.constant 0 : i32
    %c0_i32_0 = arith.constant 0 : i32
    %c0_i32_1 = arith.constant 0 : i32
    return %c0_i32, %c0_i32_0 : i32, i32
  }
  func.func @transform_8(%arg0: i32) -> (i32, i32, i32) {
    %c0_i32 = arith.constant 0 : i32
    %c0_i32_0 = arith.constant 0 : i32
    %c0_i32_1 = arith.constant 0 : i32
    return %arg0, %c0_i32, %c0_i32_0 : i32, i32, i32
  }
}

</mosaic_0001>

<llo_original>
// kernel: tpu_custom_call.1
$region0: #{tpu_custom_call.1}
  #allocation0 [shape = 'u32[]', space=smem, size = 0x4, offset = 0x4, fixed_abs, tag = 'smem constant byte address 0x4 - core index']
  #allocation1 [shape = 'u32[72,128]{1,0:T(1,128)}', space=vmem, size = 0x9000, scoped, tag = 'internal scratch']
  %s0 = inlined_call_operand.vmem [shape: f32[2,128,256], index: 0, kind: input, shape index: {}]
  %s1 = inlined_call_operand.hbm [shape: f32[128,128], index: 1, kind: input, shape index: {}]
  %s2 = inlined_call_operand.vmem [shape: f32[128,1], index: 2, kind: input, shape index: {}]
  %s3 = inlined_call_operand.vmem [shape: f32[128,1], index: 3, kind: input, shape index: {}]
  %s4 = inlined_call_operand.vmem [shape: bf16[384,128], index: 4, kind: input, shape index: {}]
  %s5 = inlined_call_operand.vmem [shape: f32[384,1], index: 5, kind: input, shape index: {}]
  %s6 = inlined_call_operand.vmem [shape: bf16[128,128], index: 6, kind: input, shape index: {}]
  %s7 = inlined_call_operand.vmem [shape: f32[128,1], index: 7, kind: input, shape index: {}]
  %s8 = inlined_call_operand.hbm [shape: f32[2,128,256], index: 8, kind: output, shape index: {}]
  %s9 = sld [smem:[#allocation0]]
  $region69: #{tpu_custom_call.1} parent=0
    _
  %s11 = ssub.s32 1, %s9
  %s12 = scalar_select 0, %s11, %s9
  $region1: #{tpu_custom_call.1} parent=0
    #allocation2 [shape = 'u8[65536]{0}', space=vmem, size = 0x10000, scoped, tag = 'input window, operand 1, single buffered']
    #allocation3 [shape = 's32[2]{0}', space=sflag, size = 0x8, scoped, tag = 'scoped memory for tpu_custom_call.1']
    #allocation4 [shape = 's32[2]{0}', space=sflag, size = 0x8, scoped, tag = 'scoped memory for tpu_custom_call.1']
    #allocation5 [shape = 'u8[262144]{0}', space=vmem, size = 0x40000, scoped, tag = 'output window, operand 0']
    %13 = vsyncpa [#allocation3], 0
    %14 = vsyncpa [#allocation4], 0
    %s15 = scalar_lea.sflag [#allocation4], 1
    %16 = vsyncpa %s15, 0
    loop: start=0, step=1, limit=4
    $region2: #{tpu_custom_call.1} parent=1 // loop_pre_header
      _
    $region3: #{tpu_custom_call.1} parent=1 // loop_header
      %s18 = sphi 0, %s22
      %p19 = scmp.ge.s32.totalorder %s18, 4
      %s28 = sphi 0, %s30
      %s31 = sphi 0, %s28
      %s32 = sphi 0, %s31
      %s48 = sphi 0, %s32
      %s52 = sphi 0, %s52
      %s54 = sphi 0, %s52
      %s55 = sphi 0, %s54
      %s69 = sphi 0, %s55
      %s73 = sphi 0, %s73
      %s75 = sphi 0, %s73
      %s76 = sphi 0, %s75
      %s90 = sphi 0, %s76
      %s94 = sphi 0, %s94
      %s96 = sphi 0, %s94
      %s97 = sphi 0, %s96
      %s111 = sphi 0, %s97
      %s115 = sphi 0, %s115
      %s117 = sphi 0, %s115
      %s118 = sphi 0, %s117
      %s132 = sphi 0, %s118
      %s136 = sphi 0, %s136
      %s138 = sphi 0, %s136
      %s139 = sphi 0, %s138
      %s153 = sphi 0, %s139
      %s157 = sphi 0, %s157
      %s159 = sphi 0, %s157
      %s160 = sphi 0, %s159
      %s174 = sphi 0, %s160
      %s178 = sphi 0, %s178
      %s180 = sphi 0, %s178
      %s181 = sphi 0, %s180
      %s195 = sphi 0, %s181
      %s201 = sphi 0, %s203
      %s204 = sphi 0, %s201
      %s205 = sphi 0, %s204
      %s221 = sphi 0, %s205
    $region4: #{tpu_custom_call.1} parent=1 // loop_header_branch
      %21 = sbr.rel (%p19) target = $region8
    $region5: #{tpu_custom_call.1} parent=1 // loop_body
      %s23 = ssub.s32 %s18, 1
      %s24 = ssub.s32 %s18, 2
      %s25 = sadd.s32 %s18, 1
      %s26 = ssub.s32 %s18, %s25
      %p27 = scmp.eq.s32.totalorder %s26, 0
      %s29 = sadd.s32 %s28, 1
      %s30 = scalar_select %p27, %s28, %s29
      %p33 = pneg %p27
      %p34 = scmp.eq.s32.totalorder %s18, 1
      %p35 = por %p33, %p34
      %p36 = scmp.ne.s32.totalorder %s28, %s31
      %p37 = scmp.eq.s32.totalorder %s18, 0
      %p38 = por %p36, %p37
      %p39 = scmp.ne.s32.totalorder %s28, %s31
      %p40 = scmp.eq.s32.totalorder %s23, 1
      %p41 = por %p39, %p40
      %p42 = scmp.ne.s32.totalorder %s31, %s32
      %p43 = scmp.eq.s32.totalorder %s23, 0
      %p44 = por %p42, %p43
      %p45 = scmp.ne.s32.totalorder %s31, %s32
      %p46 = scmp.eq.s32.totalorder %s24, 1
      %p47 = por %p45, %p46
      %p49 = scmp.ne.s32.totalorder %s32, %s48
      %p50 = scmp.eq.s32.totalorder %s24, 0
      %p51 = por %p49, %p50
      %s53 = sadd.s32 %s52, 1
      %p56 = scmp.eq.s32.totalorder %s18, 1
      %p57 = scmp.ne.s32.totalorder %s52, %s54
      %p58 = scmp.eq.s32.totalorder %s18, 0
      %p59 = por %p57, %p58
      %p60 = scmp.ne.s32.totalorder %s52, %s54
      %p61 = scmp.eq.s32.totalorder %s23, 1
      %p62 = por %p60, %p61
      %p63 = scmp.ne.s32.totalorder %s54, %s55
      %p64 = scmp.eq.s32.totalorder %s23, 0
      %p65 = por %p63, %p64
      %p66 = scmp.ne.s32.totalorder %s54, %s55
      %p67 = scmp.eq.s32.totalorder %s24, 1
      %p68 = por %p66, %p67
      %p70 = scmp.ne.s32.totalorder %s55, %s69
      %p71 = scmp.eq.s32.totalorder %s24, 0
      %p72 = por %p70, %p71
      %s74 = sadd.s32 %s73, 1
      %p77 = scmp.eq.s32.totalorder %s18, 1
      %p78 = scmp.ne.s32.totalorder %s73, %s75
      %p79 = scmp.eq.s32.totalorder %s18, 0
      %p80 = por %p78, %p79
      %p81 = scmp.ne.s32.totalorder %s73, %s75
      %p82 = scmp.eq.s32.totalorder %s23, 1
      %p83 = por %p81, %p82
      %p84 = scmp.ne.s32.totalorder %s75, %s76
      %p85 = scmp.eq.s32.totalorder %s23, 0
      %p86 = por %p84, %p85
      %p87 = scmp.ne.s32.totalorder %s75, %s76
      %p88 = scmp.eq.s32.totalorder %s24, 1
      %p89 = por %p87, %p88
      %p91 = scmp.ne.s32.totalorder %s76, %s90
      %p92 = scmp.eq.s32.totalorder %s24, 0
      %p93 = por %p91, %p92
      %s95 = sadd.s32 %s94, 1
      %p98 = scmp.eq.s32.totalorder %s18, 1
      %p99 = scmp.ne.s32.totalorder %s94, %s96
      %p100 = scmp.eq.s32.totalorder %s18, 0
      %p101 = por %p99, %p100
      %p102 = scmp.ne.s32.totalorder %s94, %s96
      %p103 = scmp.eq.s32.totalorder %s23, 1
      %p104 = por %p102, %p103
      %p105 = scmp.ne.s32.totalorder %s96, %s97
      %p106 = scmp.eq.s32.totalorder %s23, 0
      %p107 = por %p105, %p106
      %p108 = scmp.ne.s32.totalorder %s96, %s97
      %p109 = scmp.eq.s32.totalorder %s24, 1
      %p110 = por %p108, %p109
      %p112 = scmp.ne.s32.totalorder %s97, %s111
      %p113 = scmp.eq.s32.totalorder %s24, 0
      %p114 = por %p112, %p113
      %s116 = sadd.s32 %s115, 1
      %p119 = scmp.eq.s32.totalorder %s18, 1
      %p120 = scmp.ne.s32.totalorder %s115, %s117
      %p121 = scmp.eq.s32.totalorder %s18, 0
      %p122 = por %p120, %p121
      %p123 = scmp.ne.s32.totalorder %s115, %s117
      %p124 = scmp.eq.s32.totalorder %s23, 1
      %p125 = por %p123, %p124
      %p126 = scmp.ne.s32.totalorder %s117, %s118
      %p127 = scmp.eq.s32.totalorder %s23, 0
      %p128 = por %p126, %p127
      %p129 = scmp.ne.s32.totalorder %s117, %s118
      %p130 = scmp.eq.s32.totalorder %s24, 1
      %p131 = por %p129, %p130
      %p133 = scmp.ne.s32.totalorder %s118, %s132
      %p134 = scmp.eq.s32.totalorder %s24, 0
      %p135 = por %p133, %p134
      %s137 = sadd.s32 %s136, 1
      %p140 = scmp.eq.s32.totalorder %s18, 1
      %p141 = scmp.ne.s32.totalorder %s136, %s138
      %p142 = scmp.eq.s32.totalorder %s18, 0
      %p143 = por %p141, %p142
      %p144 = scmp.ne.s32.totalorder %s136, %s138
      %p145 = scmp.eq.s32.totalorder %s23, 1
      %p146 = por %p144, %p145
      %p147 = scmp.ne.s32.totalorder %s138, %s139
      %p148 = scmp.eq.s32.totalorder %s23, 0
      %p149 = por %p147, %p148
      %p150 = scmp.ne.s32.totalorder %s138, %s139
      %p151 = scmp.eq.s32.totalorder %s24, 1
      %p152 = por %p150, %p151
      %p154 = scmp.ne.s32.totalorder %s139, %s153
      %p155 = scmp.eq.s32.totalorder %s24, 0
      %p156 = por %p154, %p155
      %s158 = sadd.s32 %s157, 1
      %p161 = scmp.eq.s32.totalorder %s18, 1
      %p162 = scmp.ne.s32.totalorder %s157, %s159
      %p163 = scmp.eq.s32.totalorder %s18, 0
      %p164 = por %p162, %p163
      %p165 = scmp.ne.s32.totalorder %s157, %s159
      %p166 = scmp.eq.s32.totalorder %s23, 1
      %p167 = por %p165, %p166
      %p168 = scmp.ne.s32.totalorder %s159, %s160
      %p169 = scmp.eq.s32.totalorder %s23, 0
      %p170 = por %p168, %p169
      %p171 = scmp.ne.s32.totalorder %s159, %s160
      %p172 = scmp.eq.s32.totalorder %s24, 1
      %p173 = por %p171, %p172
      %p175 = scmp.ne.s32.totalorder %s160, %s174
      %p176 = scmp.eq.s32.totalorder %s24, 0
      %p177 = por %p175, %p176
      %s179 = sadd.s32 %s178, 1
      %p182 = scmp.eq.s32.totalorder %s18, 1
      %p183 = scmp.ne.s32.totalorder %s178, %s180
      %p184 = scmp.eq.s32.totalorder %s18, 0
      %p185 = por %p183, %p184
      %p186 = scmp.ne.s32.totalorder %s178, %s180
      %p187 = scmp.eq.s32.totalorder %s23, 1
      %p188 = por %p186, %p187
      %p189 = scmp.ne.s32.totalorder %s180, %s181
      %p190 = scmp.eq.s32.totalorder %s23, 0
      %p191 = por %p189, %p190
      %p192 = scmp.ne.s32.totalorder %s180, %s181
      %p193 = scmp.eq.s32.totalorder %s24, 1
      %p194 = por %p192, %p193
      %p196 = scmp.ne.s32.totalorder %s181, %s195
      %p197 = scmp.eq.s32.totalorder %s24, 0
      %p198 = por %p196, %p197
      %s199 = ssub.s32 %s18, %s25
      %p200 = scmp.eq.s32.totalorder %s199, 0
      %s202 = sadd.s32 %s201, 1
      %s203 = scalar_select %p200, %s201, %s202
      %p206 = pneg %p200
      %p207 = scmp.eq.s32.totalorder %s18, 1
      %p208 = por %p206, %p207
      %p209 = scmp.ne.s32.totalorder %s201, %s204
      %p210 = scmp.eq.s32.totalorder %s18, 0
      %p211 = por %p209, %p210
      %p212 = scmp.ne.s32.totalorder %s201, %s204
      %p213 = scmp.eq.s32.totalorder %s23, 1
      %p214 = por %p212, %p213
      %p215 = scmp.ne.s32.totalorder %s204, %s205
      %p216 = scmp.eq.s32.totalorder %s23, 0
      %p217 = por %p215, %p216
      %p218 = scmp.ne.s32.totalorder %s204, %s205
      %p219 = scmp.eq.s32.totalorder %s24, 1
      %p220 = por %p218, %p219
      %p222 = scmp.ne.s32.totalorder %s205, %s221
      %p223 = scmp.eq.s32.totalorder %s24, 0
      %p224 = por %p222, %p223
      %p225 = scmp.le.s32.totalorder 1, %s18
      %p226 = scmp.lt.s32.totalorder %s18, 3
      %p227 = pnand %p225, %p226
      %p228 = pneg %p227
      // Predicated region
      $region9: #{tpu_custom_call.1} parent=5 // pred_check
        _
      $region10: #{tpu_custom_call.1} parent=5 // pred_check_branch
        %230 = sbr.rel (%p227) target = $region12
      $region11: #{tpu_custom_call.1} parent=5 // pred_region
        %s231 = ssub.s32 %s18, 1
        // Predicated region
        $region13: #{tpu_custom_call.1} parent=11 // pred_check
          %p232 = pneg %p65
        $region14: #{tpu_custom_call.1} parent=11 // pred_check_branch
          %234 = sbr.rel (%p232) target = $region16
        $region15: #{tpu_custom_call.1} parent=11 // pred_region
          %236 = vsyncadd [#allocation3], 0
          %s237 = sshll.u32 %s1, 4
          %s238 = int_to_ptr.hbm [resolvable:$true] %s237
          %s239 = sshll.u32 [#allocation2], 4
          %s240 = int_to_ptr.vmem [resolvable:$true] %s239
          %245 = dma.hbm_to_vmem [thread:$0]  %s238, 2048, %s240, [#allocation3], 128, 128, 8
        $region16: #{tpu_custom_call.1} parent=11 // pred_fallthru
          _
        // Predicated region
        $region17: #{tpu_custom_call.1} parent=11 // pred_check
          %p246 = pneg %p86
        $region18: #{tpu_custom_call.1} parent=11 // pred_check_branch
          %248 = sbr.rel (%p246) target = $region20
        $region19: #{tpu_custom_call.1} parent=11 // pred_region
          _
        $region20: #{tpu_custom_call.1} parent=11 // pred_fallthru
          _
        // Predicated region
        $region21: #{tpu_custom_call.1} parent=11 // pred_check
          %p249 = pneg %p107
        $region22: #{tpu_custom_call.1} parent=11 // pred_check_branch
          %251 = sbr.rel (%p249) target = $region24
        $region23: #{tpu_custom_call.1} parent=11 // pred_region
          _
        $region24: #{tpu_custom_call.1} parent=11 // pred_fallthru
          _
        // Predicated region
        $region25: #{tpu_custom_call.1} parent=11 // pred_check
          %p252 = pneg %p128
        $region26: #{tpu_custom_call.1} parent=11 // pred_check_branch
          %254 = sbr.rel (%p252) target = $region28
        $region27: #{tpu_custom_call.1} parent=11 // pred_region
          _
        $region28: #{tpu_custom_call.1} parent=11 // pred_fallthru
          _
        // Predicated region
        $region29: #{tpu_custom_call.1} parent=11 // pred_check
          %p255 = pneg %p149
        $region30: #{tpu_custom_call.1} parent=11 // pred_check_branch
          %257 = sbr.rel (%p255) target = $region32
        $region31: #{tpu_custom_call.1} parent=11 // pred_region
          _
        $region32: #{tpu_custom_call.1} parent=11 // pred_fallthru
          _
        // Predicated region
        $region33: #{tpu_custom_call.1} parent=11 // pred_check
          %p258 = pneg %p170
        $region34: #{tpu_custom_call.1} parent=11 // pred_check_branch
          %260 = sbr.rel (%p258) target = $region36
        $region35: #{tpu_custom_call.1} parent=11 // pred_region
          _
        $region36: #{tpu_custom_call.1} parent=11 // pred_fallthru
          _
        // Predicated region
        $region37: #{tpu_custom_call.1} parent=11 // pred_check
          %p261 = pneg %p191
        $region38: #{tpu_custom_call.1} parent=11 // pred_check_branch
          %263 = sbr.rel (%p261) target = $region40
        $region39: #{tpu_custom_call.1} parent=11 // pred_region
          _
        $region40: #{tpu_custom_call.1} parent=11 // pred_fallthru
          _
      $region12: #{tpu_custom_call.1} parent=5 // pred_fallthru
        _
      %p264 = scmp.lt.s32.totalorder %s18, 2
      // Predicated region
      $region41: #{tpu_custom_call.1} parent=5 // pred_check
        %p265 = pneg %p264
      $region42: #{tpu_custom_call.1} parent=5 // pred_check_branch
        %267 = sbr.rel (%p265) target = $region44
      $region43: #{tpu_custom_call.1} parent=5 // pred_region
        // Predicated region
        $region45: #{tpu_custom_call.1} parent=43 // pred_check
          %p268 = pneg %p38
        $region46: #{tpu_custom_call.1} parent=43 // pred_check_branch
          %270 = sbr.rel (%p268) target = $region48
        $region47: #{tpu_custom_call.1} parent=43 // pred_region
          %p271 = scmp.lt.s32.totalorder %s18, 1
          %s272 = scalar_select %p271, %s18, 1
          %s273 = smul.addr %s272, 32
          %s274 = smul.addr %s273, 8
          %s275 = scalar_lea.vmem %s0, %s274
        $region48: #{tpu_custom_call.1} parent=43 // pred_fallthru
          _
      $region44: #{tpu_custom_call.1} parent=5 // pred_fallthru
        _
      %p276 = scmp.le.s32.totalorder 1, %s18
      %p277 = scmp.lt.s32.totalorder %s18, 3
      %p278 = pnand %p276, %p277
      %p279 = pneg %p278
      // Predicated region
      $region49: #{tpu_custom_call.1} parent=5 // pred_check
        _
      $region50: #{tpu_custom_call.1} parent=5 // pred_check_branch
        %281 = sbr.rel (%p278) target = $region52
      $region51: #{tpu_custom_call.1} parent=5 // pred_region
        %s282 = ssub.s32 %s18, 1
        // Predicated region
        $region53: #{tpu_custom_call.1} parent=51 // pred_check
          %p283 = pneg %p65
        $region54: #{tpu_custom_call.1} parent=51 // pred_check_branch
          %285 = sbr.rel (%p283) target = $region56
        $region55: #{tpu_custom_call.1} parent=51 // pred_region
          %287 = dma.done [#allocation3], 2048
        $region56: #{tpu_custom_call.1} parent=51 // pred_fallthru
          _
        %p288 = scmp.lt.s32.totalorder %s23, 1
        %s289 = scalar_select %p288, %s23, 1
        %s290 = smul.addr %s289, 32
        %s291 = smul.addr %s290, 8
        %s292 = scalar_lea.vmem %s0, %s291
        %p293 = pneg %p44
        %p294 = pneg %p41
        %p295 = pneg %p65
        %p296 = pneg %p62
        %p297 = pneg %p86
        %p298 = pneg %p83
        %p299 = pneg %p107
        %p300 = pneg %p104
        %p301 = pneg %p128
        %p302 = pneg %p125
        %p303 = pneg %p149
        %p304 = pneg %p146
        %p305 = pneg %p170
        %p306 = pneg %p167
        %p307 = pneg %p191
        %p308 = pneg %p188
        %p309 = pneg %p217
        %p310 = pneg %p214
        %s311 = sand.u32 %s204, 1
        %s312 = scalar_lea.sflag [#allocation4], %s311
        %s313 = sand.u32 %s204, 1
        %s314 = smul.addr %s313, 256
        %s315 = scalar_lea.vmem [#allocation5], %s314
        %p316 = scmp.lt.s32.totalorder %s23, 1
        %s317 = scalar_select %p316, %s23, 1
        %s318 = smul.addr %s317, 32
        %s319 = smul.addr %s318, 8
        %s320 = scalar_lea.vmem %s0, %s319
        %v321 = vld [vmem:[%s320] sm:$0xff]
        %v322 = vld [vmem:[%s320 + $0x8] sm:$0xff]
        %v323 = vld [vmem:[%s320 + $0x10] sm:$0xff]
        %v324 = vld [vmem:[%s320 + $0x18] sm:$0xff]
        %v325 = vld [vmem:[%s320 + $0x20] sm:$0xff]
        %v326 = vld [vmem:[%s320 + $0x28] sm:$0xff]
        %v327 = vld [vmem:[%s320 + $0x30] sm:$0xff]
        %v328 = vld [vmem:[%s320 + $0x38] sm:$0xff]
        %v329 = vld [vmem:[%s320 + $0x40] sm:$0xff]
        %v330 = vld [vmem:[%s320 + $0x48] sm:$0xff]
        %v331 = vld [vmem:[%s320 + $0x50] sm:$0xff]
        %v332 = vld [vmem:[%s320 + $0x58] sm:$0xff]
        %v333 = vld [vmem:[%s320 + $0x60] sm:$0xff]
        %v334 = vld [vmem:[%s320 + $0x68] sm:$0xff]
        %v335 = vld [vmem:[%s320 + $0x70] sm:$0xff]
        %v336 = vld [vmem:[%s320 + $0x78] sm:$0xff]
        %v337 = vld [vmem:[%s320 + $0x80] sm:$0xff]
        %v338 = vld [vmem:[%s320 + $0x88] sm:$0xff]
        %v339 = vld [vmem:[%s320 + $0x90] sm:$0xff]
        %v340 = vld [vmem:[%s320 + $0x98] sm:$0xff]
        %v341 = vld [vmem:[%s320 + $0xa0] sm:$0xff]
        %v342 = vld [vmem:[%s320 + $0xa8] sm:$0xff]
        %v343 = vld [vmem:[%s320 + $0xb0] sm:$0xff]
        %v344 = vld [vmem:[%s320 + $0xb8] sm:$0xff]
        %v345 = vld [vmem:[%s320 + $0xc0] sm:$0xff]
        %v346 = vld [vmem:[%s320 + $0xc8] sm:$0xff]
        %v347 = vld [vmem:[%s320 + $0xd0] sm:$0xff]
        %v348 = vld [vmem:[%s320 + $0xd8] sm:$0xff]
        %v349 = vld [vmem:[%s320 + $0xe0] sm:$0xff]
        %v350 = vld [vmem:[%s320 + $0xe8] sm:$0xff]
        %v351 = vld [vmem:[%s320 + $0xf0] sm:$0xff]
        %v352 = vld [vmem:[%s320 + $0xf8] sm:$0xff]
        %v353 = vadd.f32 %v321, %v322
        %354 = vadd.xlane.f32.xlu0 %v353
        %v355 = vpop.xlane.xlu0 %354
        %v356 = vadd.f32 %v323, %v324
        %357 = vadd.xlane.f32.xlu0 %v356
        %v358 = vpop.xlane.xlu0 %357
        %v359 = vadd.f32 %v325, %v326
        %360 = vadd.xlane.f32.xlu0 %v359
        %v361 = vpop.xlane.xlu0 %360
        %v362 = vadd.f32 %v327, %v328
        %363 = vadd.xlane.f32.xlu0 %v362
        %v364 = vpop.xlane.xlu0 %363
        %v365 = vadd.f32 %v329, %v330
        %366 = vadd.xlane.f32.xlu0 %v365
        %v367 = vpop.xlane.xlu0 %366
        %v368 = vadd.f32 %v331, %v332
        %369 = vadd.xlane.f32.xlu0 %v368
        %v370 = vpop.xlane.xlu0 %369
        %v371 = vadd.f32 %v333, %v334
        %372 = vadd.xlane.f32.xlu0 %v371
        %v373 = vpop.xlane.xlu0 %372
        %v374 = vadd.f32 %v335, %v336
        %375 = vadd.xlane.f32.xlu0 %v374
        %v376 = vpop.xlane.xlu0 %375
        %v377 = vadd.f32 %v337, %v338
        %378 = vadd.xlane.f32.xlu0 %v377
        %v379 = vpop.xlane.xlu0 %378
        %v380 = vadd.f32 %v339, %v340
        %381 = vadd.xlane.f32.xlu0 %v380
        %v382 = vpop.xlane.xlu0 %381
        %v383 = vadd.f32 %v341, %v342
        %384 = vadd.xlane.f32.xlu0 %v383
        %v385 = vpop.xlane.xlu0 %384
        %v386 = vadd.f32 %v343, %v344
        %387 = vadd.xlane.f32.xlu0 %v386
        %v388 = vpop.xlane.xlu0 %387
        %v389 = vadd.f32 %v345, %v346
        %390 = vadd.xlane.f32.xlu0 %v389
        %v391 = vpop.xlane.xlu0 %390
        %v392 = vadd.f32 %v347, %v348
        %393 = vadd.xlane.f32.xlu0 %v392
        %v394 = vpop.xlane.xlu0 %393
        %v395 = vadd.f32 %v349, %v350
        %396 = vadd.xlane.f32.xlu0 %v395
        %v397 = vpop.xlane.xlu0 %396
        %v398 = vadd.f32 %v351, %v352
        %399 = vadd.xlane.f32.xlu0 %v398
        %v400 = vpop.xlane.xlu0 %399
        %v401 = vld [vmem:[#allocation2] sm:$0xff]
        %v402 = vld [vmem:[#allocation2 + $0x8] sm:$0xff]
        %v403 = vld [vmem:[#allocation2 + $0x10] sm:$0xff]
        %v404 = vld [vmem:[#allocation2 + $0x18] sm:$0xff]
        %v405 = vld [vmem:[#allocation2 + $0x20] sm:$0xff]
        %v406 = vld [vmem:[#allocation2 + $0x28] sm:$0xff]
        %v407 = vld [vmem:[#allocation2 + $0x30] sm:$0xff]
        %v408 = vld [vmem:[#allocation2 + $0x38] sm:$0xff]
        %v409 = vld [vmem:[#allocation2 + $0x40] sm:$0xff]
        %v410 = vld [vmem:[#allocation2 + $0x48] sm:$0xff]
        %v411 = vld [vmem:[#allocation2 + $0x50] sm:$0xff]
        %v412 = vld [vmem:[#allocation2 + $0x58] sm:$0xff]
        %v413 = vld [vmem:[#allocation2 + $0x60] sm:$0xff]
        %v414 = vld [vmem:[#allocation2 + $0x68] sm:$0xff]
        %v415 = vld [vmem:[#allocation2 + $0x70] sm:$0xff]
        %v416 = vld [vmem:[#allocation2 + $0x78] sm:$0xff]
        %417 = vmatpush.msra.mxu0 %v400
        %418 = vmatpush.msra.mxu0 %v397
        %419 = vmatpush.msra.mxu0 %v394
        %420 = vmatpush.msra.mxu0 %v391
        %421 = vmatpush.msra.mxu0 %v388
        %422 = vmatpush.msra.mxu0 %v385
        %423 = vmatpush.msra.mxu0 %v382
        %424 = vmatpush.msra.mxu0 %v379
        %425 = vmatpush.msra.mxu0 %v376
        %426 = vmatpush.msra.mxu0 %v373
        %427 = vmatpush.msra.mxu0 %v370
        %428 = vmatpush.msra.mxu0 %v367
        %429 = vmatpush.msra.mxu0 %v364
        %430 = vmatpush.msra.mxu0 %v361
        %431 = vmatpush.msra.mxu0 %v358
        %432 = vmatpush.msra.mxu0 %v355
        %433 = vmatmul.f32.gmra.mxu0 %v401
        %v434 = vpop.f32.mrf.mxu0
        %v435 = vadd.f32 0.0, %v434
        %436 = vmatmul.f32.gmra.mxu0 %v402
        %v437 = vpop.f32.mrf.mxu0
        %v438 = vadd.f32 0.0, %v437
        %439 = vmatmul.f32.gmra.mxu0 %v403
        %v440 = vpop.f32.mrf.mxu0
        %v441 = vadd.f32 0.0, %v440
        %442 = vmatmul.f32.gmra.mxu0 %v404
        %v443 = vpop.f32.mrf.mxu0
        %v444 = vadd.f32 0.0, %v443
        %445 = vmatmul.f32.gmra.mxu0 %v405
        %v446 = vpop.f32.mrf.mxu0
        %v447 = vadd.f32 0.0, %v446
        %448 = vmatmul.f32.gmra.mxu0 %v406
        %v449 = vpop.f32.mrf.mxu0
        %v450 = vadd.f32 0.0, %v449
        %451 = vmatmul.f32.gmra.mxu0 %v407
        %v452 = vpop.f32.mrf.mxu0
        %v453 = vadd.f32 0.0, %v452
        %454 = vmatmul.f32.gmra.mxu0 %v408
        %v455 = vpop.f32.mrf.mxu0
        %v456 = vadd.f32 0.0, %v455
        %457 = vmatmul.f32.gmra.mxu0 %v409
        %v458 = vpop.f32.mrf.mxu0
        %v459 = vadd.f32 0.0, %v458
        %460 = vmatmul.f32.gmra.mxu0 %v410
        %v461 = vpop.f32.mrf.mxu0
        %v462 = vadd.f32 0.0, %v461
        %463 = vmatmul.f32.gmra.mxu0 %v411
        %v464 = vpop.f32.mrf.mxu0
        %v465 = vadd.f32 0.0, %v464
        %466 = vmatmul.f32.gmra.mxu0 %v412
        %v467 = vpop.f32.mrf.mxu0
        %v468 = vadd.f32 0.0, %v467
        %469 = vmatmul.f32.gmra.mxu0 %v413
        %v470 = vpop.f32.mrf.mxu0
        %v471 = vadd.f32 0.0, %v470
        %472 = vmatmul.f32.gmra.mxu0 %v414
        %v473 = vpop.f32.mrf.mxu0
        %v474 = vadd.f32 0.0, %v473
        %475 = vmatmul.f32.gmra.mxu0 %v415
        %v476 = vpop.f32.mrf.mxu0
        %v477 = vadd.f32 0.0, %v476
        %478 = vmatmul.f32.gmra.mxu0 %v416
        %v479 = vpop.f32.mrf.mxu0
        %v480 = vadd.f32 0.0, %v479
        %481 = vdwg.mxu0
        %483 = vset.pattern.permute.xlu0 0
        %484 = vperm.xlu0 %483, %v435
        %v485 = vpop.permute.xlu0 %484
        %488 = vset.pattern.permute.xlu0 0
        %489 = vperm.xlu0 %488, %v438
        %v490 = vpop.permute.xlu0 %489
        %493 = vset.pattern.permute.xlu0 0
        %494 = vperm.xlu0 %493, %v441
        %v495 = vpop.permute.xlu0 %494
        %498 = vset.pattern.permute.xlu0 0
        %499 = vperm.xlu0 %498, %v444
        %v500 = vpop.permute.xlu0 %499
        %503 = vset.pattern.permute.xlu0 0
        %504 = vperm.xlu0 %503, %v447
        %v505 = vpop.permute.xlu0 %504
        %508 = vset.pattern.permute.xlu0 0
        %509 = vperm.xlu0 %508, %v450
        %v510 = vpop.permute.xlu0 %509
        %513 = vset.pattern.permute.xlu0 0
        %514 = vperm.xlu0 %513, %v453
        %v515 = vpop.permute.xlu0 %514
        %518 = vset.pattern.permute.xlu0 0
        %519 = vperm.xlu0 %518, %v456
        %v520 = vpop.permute.xlu0 %519
        %523 = vset.pattern.permute.xlu0 0
        %524 = vperm.xlu0 %523, %v459
        %v525 = vpop.permute.xlu0 %524
        %528 = vset.pattern.permute.xlu0 0
        %529 = vperm.xlu0 %528, %v462
        %v530 = vpop.permute.xlu0 %529
        %533 = vset.pattern.permute.xlu0 0
        %534 = vperm.xlu0 %533, %v465
        %v535 = vpop.permute.xlu0 %534
        %538 = vset.pattern.permute.xlu0 0
        %539 = vperm.xlu0 %538, %v468
        %v540 = vpop.permute.xlu0 %539
        %543 = vset.pattern.permute.xlu0 0
        %544 = vperm.xlu0 %543, %v471
        %v545 = vpop.permute.xlu0 %544
        %548 = vset.pattern.permute.xlu0 0
        %549 = vperm.xlu0 %548, %v474
        %v550 = vpop.permute.xlu0 %549
        %553 = vset.pattern.permute.xlu0 0
        %554 = vperm.xlu0 %553, %v477
        %v555 = vpop.permute.xlu0 %554
        %558 = vset.pattern.permute.xlu0 0
        %559 = vperm.xlu0 %558, %v480
        %v560 = vpop.permute.xlu0 %559
        %v562 = vsub.f32 %v321, %v485
        %v563 = vsub.f32 %v322, %v485
        %v564 = vsub.f32 %v323, %v490
        %v565 = vsub.f32 %v324, %v490
        %v566 = vsub.f32 %v325, %v495
        %v567 = vsub.f32 %v326, %v495
        %v568 = vsub.f32 %v327, %v500
        %v569 = vsub.f32 %v328, %v500
        %v570 = vsub.f32 %v329, %v505
        %v571 = vsub.f32 %v330, %v505
        %v572 = vsub.f32 %v331, %v510
        %v573 = vsub.f32 %v332, %v510
        %v574 = vsub.f32 %v333, %v515
        %v575 = vsub.f32 %v334, %v515
        %v576 = vsub.f32 %v335, %v520
        %v577 = vsub.f32 %v336, %v520
        %v578 = vsub.f32 %v337, %v525
        %v579 = vsub.f32 %v338, %v525
        %v580 = vsub.f32 %v339, %v530
        %v581 = vsub.f32 %v340, %v530
        %v582 = vsub.f32 %v341, %v535
        %v583 = vsub.f32 %v342, %v535
        %v584 = vsub.f32 %v343, %v540
        %v585 = vsub.f32 %v344, %v540
        %v586 = vsub.f32 %v345, %v545
        %v587 = vsub.f32 %v346, %v545
        %v588 = vsub.f32 %v347, %v550
        %v589 = vsub.f32 %v348, %v550
        %v590 = vsub.f32 %v349, %v555
        %v591 = vsub.f32 %v350, %v555
        %v592 = vsub.f32 %v351, %v560
        %v593 = vsub.f32 %v352, %v560
        %v594 = vmul.f32 %v562, %v562
        %v595 = vmul.f32 %v563, %v563
        %v596 = vmul.f32 %v564, %v564
        %v597 = vmul.f32 %v565, %v565
        %v598 = vmul.f32 %v566, %v566
        %v599 = vmul.f32 %v567, %v567
        %v600 = vmul.f32 %v568, %v568
        %v601 = vmul.f32 %v569, %v569
        %v602 = vmul.f32 %v570, %v570
        %v603 = vmul.f32 %v571, %v571
        %v604 = vmul.f32 %v572, %v572
        %v605 = vmul.f32 %v573, %v573
        %v606 = vmul.f32 %v574, %v574
        %v607 = vmul.f32 %v575, %v575
        %v608 = vmul.f32 %v576, %v576
        %v609 = vmul.f32 %v577, %v577
        %v610 = vmul.f32 %v578, %v578
        %v611 = vmul.f32 %v579, %v579
        %v612 = vmul.f32 %v580, %v580
        %v613 = vmul.f32 %v581, %v581
        %v614 = vmul.f32 %v582, %v582
        %v615 = vmul.f32 %v583, %v583
        %v616 = vmul.f32 %v584, %v584
        %v617 = vmul.f32 %v585, %v585
        %v618 = vmul.f32 %v586, %v586
        %v619 = vmul.f32 %v587, %v587
        %v620 = vmul.f32 %v588, %v588
        %v621 = vmul.f32 %v589, %v589
        %v622 = vmul.f32 %v590, %v590
        %v623 = vmul.f32 %v591, %v591
        %v624 = vmul.f32 %v592, %v592
        %v625 = vmul.f32 %v593, %v593
        %v626 = vadd.f32 %v594, %v595
        %627 = vadd.xlane.f32.xlu0 %v626
        %v628 = vpop.xlane.xlu0 %627
        %v629 = vadd.f32 %v596, %v597
        %630 = vadd.xlane.f32.xlu0 %v629
        %v631 = vpop.xlane.xlu0 %630
        %v632 = vadd.f32 %v598, %v599
        %633 = vadd.xlane.f32.xlu0 %v632
        %v634 = vpop.xlane.xlu0 %633
        %v635 = vadd.f32 %v600, %v601
        %636 = vadd.xlane.f32.xlu0 %v635
        %v637 = vpop.xlane.xlu0 %636
        %v638 = vadd.f32 %v602, %v603
        %639 = vadd.xlane.f32.xlu0 %v638
        %v640 = vpop.xlane.xlu0 %639
        %v641 = vadd.f32 %v604, %v605
        %642 = vadd.xlane.f32.xlu0 %v641
        %v643 = vpop.xlane.xlu0 %642
        %v644 = vadd.f32 %v606, %v607
        %645 = vadd.xlane.f32.xlu0 %v644
        %v646 = vpop.xlane.xlu0 %645
        %v647 = vadd.f32 %v608, %v609
        %648 = vadd.xlane.f32.xlu0 %v647
        %v649 = vpop.xlane.xlu0 %648
        %v650 = vadd.f32 %v610, %v611
        %651 = vadd.xlane.f32.xlu0 %v650
        %v652 = vpop.xlane.xlu0 %651
        %v653 = vadd.f32 %v612, %v613
        %654 = vadd.xlane.f32.xlu0 %v653
        %v655 = vpop.xlane.xlu0 %654
        %v656 = vadd.f32 %v614, %v615
        %657 = vadd.xlane.f32.xlu0 %v656
        %v658 = vpop.xlane.xlu0 %657
        %v659 = vadd.f32 %v616, %v617
        %660 = vadd.xlane.f32.xlu0 %v659
        %v661 = vpop.xlane.xlu0 %660
        %v662 = vadd.f32 %v618, %v619
        %663 = vadd.xlane.f32.xlu0 %v662
        %v664 = vpop.xlane.xlu0 %663
        %v665 = vadd.f32 %v620, %v621
        %666 = vadd.xlane.f32.xlu0 %v665
        %v667 = vpop.xlane.xlu0 %666
        %v668 = vadd.f32 %v622, %v623
        %669 = vadd.xlane.f32.xlu0 %v668
        %v670 = vpop.xlane.xlu0 %669
        %v671 = vadd.f32 %v624, %v625
        %672 = vadd.xlane.f32.xlu0 %v671
        %v673 = vpop.xlane.xlu0 %672
        %674 = vmatpush.msra.mxu0 %v673
        %675 = vmatpush.msra.mxu0 %v670
        %676 = vmatpush.msra.mxu0 %v667
        %677 = vmatpush.msra.mxu0 %v664
        %678 = vmatpush.msra.mxu0 %v661
        %679 = vmatpush.msra.mxu0 %v658
        %680 = vmatpush.msra.mxu0 %v655
        %681 = vmatpush.msra.mxu0 %v652
        %682 = vmatpush.msra.mxu0 %v649
        %683 = vmatpush.msra.mxu0 %v646
        %684 = vmatpush.msra.mxu0 %v643
        %685 = vmatpush.msra.mxu0 %v640
        %686 = vmatpush.msra.mxu0 %v637
        %687 = vmatpush.msra.mxu0 %v634
        %688 = vmatpush.msra.mxu0 %v631
        %689 = vmatpush.msra.mxu0 %v628
        %690 = vmatmul.f32.gmra.mxu0 %v401
        %v691 = vpop.f32.mrf.mxu0
        %v692 = vadd.f32 1e-06, %v691
        %693 = vmatmul.f32.gmra.mxu0 %v402
        %v694 = vpop.f32.mrf.mxu0
        %v695 = vadd.f32 1e-06, %v694
        %696 = vmatmul.f32.gmra.mxu0 %v403
        %v697 = vpop.f32.mrf.mxu0
        %v698 = vadd.f32 1e-06, %v697
        %699 = vmatmul.f32.gmra.mxu0 %v404
        %v700 = vpop.f32.mrf.mxu0
        %v701 = vadd.f32 1e-06, %v700
        %702 = vmatmul.f32.gmra.mxu0 %v405
        %v703 = vpop.f32.mrf.mxu0
        %v704 = vadd.f32 1e-06, %v703
        %705 = vmatmul.f32.gmra.mxu0 %v406
        %v706 = vpop.f32.mrf.mxu0
        %v707 = vadd.f32 1e-06, %v706
        %708 = vmatmul.f32.gmra.mxu0 %v407
        %v709 = vpop.f32.mrf.mxu0
        %v710 = vadd.f32 1e-06, %v709
        %711 = vmatmul.f32.gmra.mxu0 %v408
        %v712 = vpop.f32.mrf.mxu0
        %v713 = vadd.f32 1e-06, %v712
        %714 = vmatmul.f32.gmra.mxu0 %v409
        %v715 = vpop.f32.mrf.mxu0
        %v716 = vadd.f32 1e-06, %v715
        %717 = vmatmul.f32.gmra.mxu0 %v410
        %v718 = vpop.f32.mrf.mxu0
        %v719 = vadd.f32 1e-06, %v718
        %720 = vmatmul.f32.gmra.mxu0 %v411
        %v721 = vpop.f32.mrf.mxu0
        %v722 = vadd.f32 1e-06, %v721
        %723 = vmatmul.f32.gmra.mxu0 %v412
        %v724 = vpop.f32.mrf.mxu0
        %v725 = vadd.f32 1e-06, %v724
        %726 = vmatmul.f32.gmra.mxu0 %v413
        %v727 = vpop.f32.mrf.mxu0
        %v728 = vadd.f32 1e-06, %v727
        %729 = vmatmul.f32.gmra.mxu0 %v414
        %v730 = vpop.f32.mrf.mxu0
        %v731 = vadd.f32 1e-06, %v730
        %732 = vmatmul.f32.gmra.mxu0 %v415
        %v733 = vpop.f32.mrf.mxu0
        %v734 = vadd.f32 1e-06, %v733
        %735 = vmatmul.f32.gmra.mxu0 %v416
        %v736 = vpop.f32.mrf.mxu0
        %v737 = vadd.f32 1e-06, %v736
        %738 = vdwg.mxu0
        %v739 = vrsqrt.pop %v692
        %v740 = vmul.f32 %v739, %v692
        %v741 = vmul.f32 %v740, %v739
        %v742 = vmul.f32 0.5, %v741
        %v743 = vsub.f32 1.5, %v742
        %v744 = vmul.f32 %v739, %v743
        %vm745 = vweird.f32 %v692
        %vm746 = vweird.f32 %v739
        %vm747 = vmor %vm745, %vm746
        %v748 = vsel %vm747, %v739, %v744
        %v749 = vrsqrt.pop %v695
        %v750 = vmul.f32 %v749, %v695
        %v751 = vmul.f32 %v750, %v749
        %v752 = vmul.f32 0.5, %v751
        %v753 = vsub.f32 1.5, %v752
        %v754 = vmul.f32 %v749, %v753
        %vm755 = vweird.f32 %v695
        %vm756 = vweird.f32 %v749
        %vm757 = vmor %vm755, %vm756
        %v758 = vsel %vm757, %v749, %v754
        %v759 = vrsqrt.pop %v698
        %v760 = vmul.f32 %v759, %v698
        %v761 = vmul.f32 %v760, %v759
        %v762 = vmul.f32 0.5, %v761
        %v763 = vsub.f32 1.5, %v762
        %v764 = vmul.f32 %v759, %v763
        %vm765 = vweird.f32 %v698
        %vm766 = vweird.f32 %v759
        %vm767 = vmor %vm765, %vm766
        %v768 = vsel %vm767, %v759, %v764
        %v769 = vrsqrt.pop %v701
        %v770 = vmul.f32 %v769, %v701
        %v771 = vmul.f32 %v770, %v769
        %v772 = vmul.f32 0.5, %v771
        %v773 = vsub.f32 1.5, %v772
        %v774 = vmul.f32 %v769, %v773
        %vm775 = vweird.f32 %v701
        %vm776 = vweird.f32 %v769
        %vm777 = vmor %vm775, %vm776
        %v778 = vsel %vm777, %v769, %v774
        %v779 = vrsqrt.pop %v704
        %v780 = vmul.f32 %v779, %v704
        %v781 = vmul.f32 %v780, %v779
        %v782 = vmul.f32 0.5, %v781
        %v783 = vsub.f32 1.5, %v782
        %v784 = vmul.f32 %v779, %v783
        %vm785 = vweird.f32 %v704
        %vm786 = vweird.f32 %v779
        %vm787 = vmor %vm785, %vm786
        %v788 = vsel %vm787, %v779, %v784
        %v789 = vrsqrt.pop %v707
        %v790 = vmul.f32 %v789, %v707
        %v791 = vmul.f32 %v790, %v789
        %v792 = vmul.f32 0.5, %v791
        %v793 = vsub.f32 1.5, %v792
        %v794 = vmul.f32 %v789, %v793
        %vm795 = vweird.f32 %v707
        %vm796 = vweird.f32 %v789
        %vm797 = vmor %vm795, %vm796
        %v798 = vsel %vm797, %v789, %v794
        %v799 = vrsqrt.pop %v710
        %v800 = vmul.f32 %v799, %v710
        %v801 = vmul.f32 %v800, %v799
        %v802 = vmul.f32 0.5, %v801
        %v803 = vsub.f32 1.5, %v802
        %v804 = vmul.f32 %v799, %v803
        %vm805 = vweird.f32 %v710
        %vm806 = vweird.f32 %v799
        %vm807 = vmor %vm805, %vm806
        %v808 = vsel %vm807, %v799, %v804
        %v809 = vrsqrt.pop %v713
        %v810 = vmul.f32 %v809, %v713
        %v811 = vmul.f32 %v810, %v809
        %v812 = vmul.f32 0.5, %v811
        %v813 = vsub.f32 1.5, %v812
        %v814 = vmul.f32 %v809, %v813
        %vm815 = vweird.f32 %v713
        %vm816 = vweird.f32 %v809
        %vm817 = vmor %vm815, %vm816
        %v818 = vsel %vm817, %v809, %v814
        %v819 = vrsqrt.pop %v716
        %v820 = vmul.f32 %v819, %v716
        %v821 = vmul.f32 %v820, %v819
        %v822 = vmul.f32 0.5, %v821
        %v823 = vsub.f32 1.5, %v822
        %v824 = vmul.f32 %v819, %v823
        %vm825 = vweird.f32 %v716
        %vm826 = vweird.f32 %v819
        %vm827 = vmor %vm825, %vm826
        %v828 = vsel %vm827, %v819, %v824
        %v829 = vrsqrt.pop %v719
        %v830 = vmul.f32 %v829, %v719
        %v831 = vmul.f32 %v830, %v829
        %v832 = vmul.f32 0.5, %v831
        %v833 = vsub.f32 1.5, %v832
        %v834 = vmul.f32 %v829, %v833
        %vm835 = vweird.f32 %v719
        %vm836 = vweird.f32 %v829
        %vm837 = vmor %vm835, %vm836
        %v838 = vsel %vm837, %v829, %v834
        %v839 = vrsqrt.pop %v722
        %v840 = vmul.f32 %v839, %v722
        %v841 = vmul.f32 %v840, %v839
        %v842 = vmul.f32 0.5, %v841
        %v843 = vsub.f32 1.5, %v842
        %v844 = vmul.f32 %v839, %v843
        %vm845 = vweird.f32 %v722
        %vm846 = vweird.f32 %v839
        %vm847 = vmor %vm845, %vm846
        %v848 = vsel %vm847, %v839, %v844
        %v849 = vrsqrt.pop %v725
        %v850 = vmul.f32 %v849, %v725
        %v851 = vmul.f32 %v850, %v849
        %v852 = vmul.f32 0.5, %v851
        %v853 = vsub.f32 1.5, %v852
        %v854 = vmul.f32 %v849, %v853
        %vm855 = vweird.f32 %v725
        %vm856 = vweird.f32 %v849
        %vm857 = vmor %vm855, %vm856
        %v858 = vsel %vm857, %v849, %v854
        %v859 = vrsqrt.pop %v728
        %v860 = vmul.f32 %v859, %v728
        %v861 = vmul.f32 %v860, %v859
        %v862 = vmul.f32 0.5, %v861
        %v863 = vsub.f32 1.5, %v862
        %v864 = vmul.f32 %v859, %v863
        %vm865 = vweird.f32 %v728
        %vm866 = vweird.f32 %v859
        %vm867 = vmor %vm865, %vm866
        %v868 = vsel %vm867, %v859, %v864
        %v869 = vrsqrt.pop %v731
        %v870 = vmul.f32 %v869, %v731
        %v871 = vmul.f32 %v870, %v869
        %v872 = vmul.f32 0.5, %v871
        %v873 = vsub.f32 1.5, %v872
        %v874 = vmul.f32 %v869, %v873
        %vm875 = vweird.f32 %v731
        %vm876 = vweird.f32 %v869
        %vm877 = vmor %vm875, %vm876
        %v878 = vsel %vm877, %v869, %v874
        %v879 = vrsqrt.pop %v734
        %v880 = vmul.f32 %v879, %v734
        %v881 = vmul.f32 %v880, %v879
        %v882 = vmul.f32 0.5, %v881
        %v883 = vsub.f32 1.5, %v882
        %v884 = vmul.f32 %v879, %v883
        %vm885 = vweird.f32 %v734
        %vm886 = vweird.f32 %v879
        %vm887 = vmor %vm885, %vm886
        %v888 = vsel %vm887, %v879, %v884
        %v889 = vrsqrt.pop %v737
        %v890 = vmul.f32 %v889, %v737
        %v891 = vmul.f32 %v890, %v889
        %v892 = vmul.f32 0.5, %v891
        %v893 = vsub.f32 1.5, %v892
        %v894 = vmul.f32 %v889, %v893
        %vm895 = vweird.f32 %v737
        %vm896 = vweird.f32 %v889
        %vm897 = vmor %vm895, %vm896
        %v898 = vsel %vm897, %v889, %v894
        %v899 = vld [vmem:[%s2] sm:$0xff]
        %v900 = vld [vmem:[%s2 + $0x8] sm:$0xff]
        %v901 = vld [vmem:[%s2 + $0x10] sm:$0xff]
        %v902 = vld [vmem:[%s2 + $0x18] sm:$0xff]
        %v903 = vld [vmem:[%s2 + $0x20] sm:$0xff]
        %v904 = vld [vmem:[%s2 + $0x28] sm:$0xff]
        %v905 = vld [vmem:[%s2 + $0x30] sm:$0xff]
        %v906 = vld [vmem:[%s2 + $0x38] sm:$0xff]
        %v907 = vld [vmem:[%s2 + $0x40] sm:$0xff]
        %v908 = vld [vmem:[%s2 + $0x48] sm:$0xff]
        %v909 = vld [vmem:[%s2 + $0x50] sm:$0xff]
        %v910 = vld [vmem:[%s2 + $0x58] sm:$0xff]
        %v911 = vld [vmem:[%s2 + $0x60] sm:$0xff]
        %v912 = vld [vmem:[%s2 + $0x68] sm:$0xff]
        %v913 = vld [vmem:[%s2 + $0x70] sm:$0xff]
        %v914 = vld [vmem:[%s2 + $0x78] sm:$0xff]
        %v915 = vmul.f32 %v748, %v899
        %v916 = vmul.f32 %v758, %v900
        %v917 = vmul.f32 %v768, %v901
        %v918 = vmul.f32 %v778, %v902
        %v919 = vmul.f32 %v788, %v903
        %v920 = vmul.f32 %v798, %v904
        %v921 = vmul.f32 %v808, %v905
        %v922 = vmul.f32 %v818, %v906
        %v923 = vmul.f32 %v828, %v907
        %v924 = vmul.f32 %v838, %v908
        %v925 = vmul.f32 %v848, %v909
        %v926 = vmul.f32 %v858, %v910
        %v927 = vmul.f32 %v868, %v911
        %v928 = vmul.f32 %v878, %v912
        %v929 = vmul.f32 %v888, %v913
        %v930 = vmul.f32 %v898, %v914
        %932 = vset.pattern.permute.xlu0 0
        %933 = vperm.xlu0 %932, %v915
        %v934 = vpop.permute.xlu0 %933
        %937 = vset.pattern.permute.xlu0 0
        %938 = vperm.xlu0 %937, %v916
        %v939 = vpop.permute.xlu0 %938
        %942 = vset.pattern.permute.xlu0 0
        %943 = vperm.xlu0 %942, %v917
        %v944 = vpop.permute.xlu0 %943
        %947 = vset.pattern.permute.xlu0 0
        %948 = vperm.xlu0 %947, %v918
        %v949 = vpop.permute.xlu0 %948
        %952 = vset.pattern.permute.xlu0 0
        %953 = vperm.xlu0 %952, %v919
        %v954 = vpop.permute.xlu0 %953
        %957 = vset.pattern.permute.xlu0 0
        %958 = vperm.xlu0 %957, %v920
        %v959 = vpop.permute.xlu0 %958
        %962 = vset.pattern.permute.xlu0 0
        %963 = vperm.xlu0 %962, %v921
        %v964 = vpop.permute.xlu0 %963
        %967 = vset.pattern.permute.xlu0 0
        %968 = vperm.xlu0 %967, %v922
        %v969 = vpop.permute.xlu0 %968
        %972 = vset.pattern.permute.xlu0 0
        %973 = vperm.xlu0 %972, %v923
        %v974 = vpop.permute.xlu0 %973
        %977 = vset.pattern.permute.xlu0 0
        %978 = vperm.xlu0 %977, %v924
        %v979 = vpop.permute.xlu0 %978
        %982 = vset.pattern.permute.xlu0 0
        %983 = vperm.xlu0 %982, %v925
        %v984 = vpop.permute.xlu0 %983
        %987 = vset.pattern.permute.xlu0 0
        %988 = vperm.xlu0 %987, %v926
        %v989 = vpop.permute.xlu0 %988
        %992 = vset.pattern.permute.xlu0 0
        %993 = vperm.xlu0 %992, %v927
        %v994 = vpop.permute.xlu0 %993
        %997 = vset.pattern.permute.xlu0 0
        %998 = vperm.xlu0 %997, %v928
        %v999 = vpop.permute.xlu0 %998
        %1002 = vset.pattern.permute.xlu0 0
        %1003 = vperm.xlu0 %1002, %v929
        %v1004 = vpop.permute.xlu0 %1003
        %1007 = vset.pattern.permute.xlu0 0
        %1008 = vperm.xlu0 %1007, %v930
        %v1009 = vpop.permute.xlu0 %1008
        %v1011 = vmul.f32 %v562, %v934
        %v1012 = vmul.f32 %v563, %v934
        %v1013 = vmul.f32 %v564, %v939
        %v1014 = vmul.f32 %v565, %v939
        %v1015 = vmul.f32 %v566, %v944
        %v1016 = vmul.f32 %v567, %v944
        %v1017 = vmul.f32 %v568, %v949
        %v1018 = vmul.f32 %v569, %v949
        %v1019 = vmul.f32 %v570, %v954
        %v1020 = vmul.f32 %v571, %v954
        %v1021 = vmul.f32 %v572, %v959
        %v1022 = vmul.f32 %v573, %v959
        %v1023 = vmul.f32 %v574, %v964
        %v1024 = vmul.f32 %v575, %v964
        %v1025 = vmul.f32 %v576, %v969
        %v1026 = vmul.f32 %v577, %v969
        %v1027 = vmul.f32 %v578, %v974
        %v1028 = vmul.f32 %v579, %v974
        %v1029 = vmul.f32 %v580, %v979
        %v1030 = vmul.f32 %v581, %v979
        %v1031 = vmul.f32 %v582, %v984
        %v1032 = vmul.f32 %v583, %v984
        %v1033 = vmul.f32 %v584, %v989
        %v1034 = vmul.f32 %v585, %v989
        %v1035 = vmul.f32 %v586, %v994
        %v1036 = vmul.f32 %v587, %v994
        %v1037 = vmul.f32 %v588, %v999
        %v1038 = vmul.f32 %v589, %v999
        %v1039 = vmul.f32 %v590, %v1004
        %v1040 = vmul.f32 %v591, %v1004
        %v1041 = vmul.f32 %v592, %v1009
        %v1042 = vmul.f32 %v593, %v1009
        %v1043 = vld [vmem:[%s3] sm:$0xff]
        %v1044 = vld [vmem:[%s3 + $0x8] sm:$0xff]
        %v1045 = vld [vmem:[%s3 + $0x10] sm:$0xff]
        %v1046 = vld [vmem:[%s3 + $0x18] sm:$0xff]
        %v1047 = vld [vmem:[%s3 + $0x20] sm:$0xff]
        %v1048 = vld [vmem:[%s3 + $0x28] sm:$0xff]
        %v1049 = vld [vmem:[%s3 + $0x30] sm:$0xff]
        %v1050 = vld [vmem:[%s3 + $0x38] sm:$0xff]
        %v1051 = vld [vmem:[%s3 + $0x40] sm:$0xff]
        %v1052 = vld [vmem:[%s3 + $0x48] sm:$0xff]
        %v1053 = vld [vmem:[%s3 + $0x50] sm:$0xff]
        %v1054 = vld [vmem:[%s3 + $0x58] sm:$0xff]
        %v1055 = vld [vmem:[%s3 + $0x60] sm:$0xff]
        %v1056 = vld [vmem:[%s3 + $0x68] sm:$0xff]
        %v1057 = vld [vmem:[%s3 + $0x70] sm:$0xff]
        %v1058 = vld [vmem:[%s3 + $0x78] sm:$0xff]
        %1060 = vset.pattern.permute.xlu0 0
        %1061 = vperm.xlu0 %1060, %v1043
        %v1062 = vpop.permute.xlu0 %1061
        %1065 = vset.pattern.permute.xlu0 0
        %1066 = vperm.xlu0 %1065, %v1044
        %v1067 = vpop.permute.xlu0 %1066
        %1070 = vset.pattern.permute.xlu0 0
        %1071 = vperm.xlu0 %1070, %v1045
        %v1072 = vpop.permute.xlu0 %1071
        %1075 = vset.pattern.permute.xlu0 0
        %1076 = vperm.xlu0 %1075, %v1046
        %v1077 = vpop.permute.xlu0 %1076
        %1080 = vset.pattern.permute.xlu0 0
        %1081 = vperm.xlu0 %1080, %v1047
        %v1082 = vpop.permute.xlu0 %1081
        %1085 = vset.pattern.permute.xlu0 0
        %1086 = vperm.xlu0 %1085, %v1048
        %v1087 = vpop.permute.xlu0 %1086
        %1090 = vset.pattern.permute.xlu0 0
        %1091 = vperm.xlu0 %1090, %v1049
        %v1092 = vpop.permute.xlu0 %1091
        %1095 = vset.pattern.permute.xlu0 0
        %1096 = vperm.xlu0 %1095, %v1050
        %v1097 = vpop.permute.xlu0 %1096
        %1100 = vset.pattern.permute.xlu0 0
        %1101 = vperm.xlu0 %1100, %v1051
        %v1102 = vpop.permute.xlu0 %1101
        %1105 = vset.pattern.permute.xlu0 0
        %1106 = vperm.xlu0 %1105, %v1052
        %v1107 = vpop.permute.xlu0 %1106
        %1110 = vset.pattern.permute.xlu0 0
        %1111 = vperm.xlu0 %1110, %v1053
        %v1112 = vpop.permute.xlu0 %1111
        %1115 = vset.pattern.permute.xlu0 0
        %1116 = vperm.xlu0 %1115, %v1054
        %v1117 = vpop.permute.xlu0 %1116
        %1120 = vset.pattern.permute.xlu0 0
        %1121 = vperm.xlu0 %1120, %v1055
        %v1122 = vpop.permute.xlu0 %1121
        %1125 = vset.pattern.permute.xlu0 0
        %1126 = vperm.xlu0 %1125, %v1056
        %v1127 = vpop.permute.xlu0 %1126
        %1130 = vset.pattern.permute.xlu0 0
        %1131 = vperm.xlu0 %1130, %v1057
        %v1132 = vpop.permute.xlu0 %1131
        %1135 = vset.pattern.permute.xlu0 0
        %1136 = vperm.xlu0 %1135, %v1058
        %v1137 = vpop.permute.xlu0 %1136
        %v1139 = vadd.f32 %v1011, %v1062
        %v1140 = vadd.f32 %v1012, %v1062
        %v1141 = vadd.f32 %v1013, %v1067
        %v1142 = vadd.f32 %v1014, %v1067
        %v1143 = vadd.f32 %v1015, %v1072
        %v1144 = vadd.f32 %v1016, %v1072
        %v1145 = vadd.f32 %v1017, %v1077
        %v1146 = vadd.f32 %v1018, %v1077
        %v1147 = vadd.f32 %v1019, %v1082
        %v1148 = vadd.f32 %v1020, %v1082
        %v1149 = vadd.f32 %v1021, %v1087
        %v1150 = vadd.f32 %v1022, %v1087
        %v1151 = vadd.f32 %v1023, %v1092
        %v1152 = vadd.f32 %v1024, %v1092
        %v1153 = vadd.f32 %v1025, %v1097
        %v1154 = vadd.f32 %v1026, %v1097
        %v1155 = vadd.f32 %v1027, %v1102
        %v1156 = vadd.f32 %v1028, %v1102
        %v1157 = vadd.f32 %v1029, %v1107
        %v1158 = vadd.f32 %v1030, %v1107
        %v1159 = vadd.f32 %v1031, %v1112
        %v1160 = vadd.f32 %v1032, %v1112
        %v1161 = vadd.f32 %v1033, %v1117
        %v1162 = vadd.f32 %v1034, %v1117
        %v1163 = vadd.f32 %v1035, %v1122
        %v1164 = vadd.f32 %v1036, %v1122
        %v1165 = vadd.f32 %v1037, %v1127
        %v1166 = vadd.f32 %v1038, %v1127
        %v1167 = vadd.f32 %v1039, %v1132
        %v1168 = vadd.f32 %v1040, %v1132
        %v1169 = vadd.f32 %v1041, %v1137
        %v1170 = vadd.f32 %v1042, %v1137
        %v1171 = vpack.c.bf16 %v1141, %v1139
        %v1172 = vpack.c.bf16 %v1142, %v1140
        %v1173 = vpack.c.bf16 %v1145, %v1143
        %v1174 = vpack.c.bf16 %v1146, %v1144
        %v1175 = vpack.c.bf16 %v1149, %v1147
        %v1176 = vpack.c.bf16 %v1150, %v1148
        %v1177 = vpack.c.bf16 %v1153, %v1151
        %v1178 = vpack.c.bf16 %v1154, %v1152
        %v1179 = vpack.c.bf16 %v1157, %v1155
        %v1180 = vpack.c.bf16 %v1158, %v1156
        %v1181 = vpack.c.bf16 %v1161, %v1159
        %v1182 = vpack.c.bf16 %v1162, %v1160
        %v1183 = vpack.c.bf16 %v1165, %v1163
        %v1184 = vpack.c.bf16 %v1166, %v1164
        %v1185 = vpack.c.bf16 %v1169, %v1167
        %v1186 = vpack.c.bf16 %v1170, %v1168
        %v1187 = vld [vmem:[%s4] sm:$0xf]
        %v1188 = vld [vmem:[%s4 + $0x4] sm:$0xf]
        %v1189 = vld [vmem:[%s4 + $0x8] sm:$0xf]
        %v1190 = vld [vmem:[%s4 + $0xc] sm:$0xf]
        %v1191 = vld [vmem:[%s4 + $0x10] sm:$0xf]
        %v1192 = vld [vmem:[%s4 + $0x14] sm:$0xf]
        %v1193 = vld [vmem:[%s4 + $0x18] sm:$0xf]
        %v1194 = vld [vmem:[%s4 + $0x1c] sm:$0xf]
        %v1195 = vld [vmem:[%s4 + $0x20] sm:$0xf]
        %v1196 = vld [vmem:[%s4 + $0x24] sm:$0xf]
        %v1197 = vld [vmem:[%s4 + $0x28] sm:$0xf]
        %v1198 = vld [vmem:[%s4 + $0x2c] sm:$0xf]
        %v1199 = vld [vmem:[%s4 + $0x30] sm:$0xf]
        %v1200 = vld [vmem:[%s4 + $0x34] sm:$0xf]
        %v1201 = vld [vmem:[%s4 + $0x38] sm:$0xf]
        %v1202 = vld [vmem:[%s4 + $0x3c] sm:$0xf]
        %v1203 = vld [vmem:[%s4 + $0x40] sm:$0xf]
        %v1204 = vld [vmem:[%s4 + $0x44] sm:$0xf]
        %v1205 = vld [vmem:[%s4 + $0x48] sm:$0xf]
        %v1206 = vld [vmem:[%s4 + $0x4c] sm:$0xf]
        %v1207 = vld [vmem:[%s4 + $0x50] sm:$0xf]
        %v1208 = vld [vmem:[%s4 + $0x54] sm:$0xf]
        %v1209 = vld [vmem:[%s4 + $0x58] sm:$0xf]
        %v1210 = vld [vmem:[%s4 + $0x5c] sm:$0xf]
        %v1211 = vld [vmem:[%s4 + $0x60] sm:$0xf]
        %v1212 = vld [vmem:[%s4 + $0x64] sm:$0xf]
        %v1213 = vld [vmem:[%s4 + $0x68] sm:$0xf]
        %v1214 = vld [vmem:[%s4 + $0x6c] sm:$0xf]
        %v1215 = vld [vmem:[%s4 + $0x70] sm:$0xf]
        %v1216 = vld [vmem:[%s4 + $0x74] sm:$0xf]
        %v1217 = vld [vmem:[%s4 + $0x78] sm:$0xf]
        %v1218 = vld [vmem:[%s4 + $0x7c] sm:$0xf]
        %v1219 = vld [vmem:[%s4 + $0x80] sm:$0xf]
        %v1220 = vld [vmem:[%s4 + $0x84] sm:$0xf]
        %v1221 = vld [vmem:[%s4 + $0x88] sm:$0xf]
        %v1222 = vld [vmem:[%s4 + $0x8c] sm:$0xf]
        %v1223 = vld [vmem:[%s4 + $0x90] sm:$0xf]
        %v1224 = vld [vmem:[%s4 + $0x94] sm:$0xf]
        %v1225 = vld [vmem:[%s4 + $0x98] sm:$0xf]
        %v1226 = vld [vmem:[%s4 + $0x9c] sm:$0xf]
        %v1227 = vld [vmem:[%s4 + $0xa0] sm:$0xf]
        %v1228 = vld [vmem:[%s4 + $0xa4] sm:$0xf]
        %v1229 = vld [vmem:[%s4 + $0xa8] sm:$0xf]
        %v1230 = vld [vmem:[%s4 + $0xac] sm:$0xf]
        %v1231 = vld [vmem:[%s4 + $0xb0] sm:$0xf]
        %v1232 = vld [vmem:[%s4 + $0xb4] sm:$0xf]
        %v1233 = vld [vmem:[%s4 + $0xb8] sm:$0xf]
        %v1234 = vld [vmem:[%s4 + $0xbc] sm:$0xf]
        %v1235 = vld [vmem:[%s5] sm:$0xff]
        %v1236 = vld [vmem:[%s5 + $0x8] sm:$0xff]
        %v1237 = vld [vmem:[%s5 + $0x10] sm:$0xff]
        %v1238 = vld [vmem:[%s5 + $0x18] sm:$0xff]
        %v1239 = vld [vmem:[%s5 + $0x20] sm:$0xff]
        %v1240 = vld [vmem:[%s5 + $0x28] sm:$0xff]
        %v1241 = vld [vmem:[%s5 + $0x30] sm:$0xff]
        %v1242 = vld [vmem:[%s5 + $0x38] sm:$0xff]
        %v1243 = vld [vmem:[%s5 + $0x40] sm:$0xff]
        %v1244 = vld [vmem:[%s5 + $0x48] sm:$0xff]
        %v1245 = vld [vmem:[%s5 + $0x50] sm:$0xff]
        %v1246 = vld [vmem:[%s5 + $0x58] sm:$0xff]
        %v1247 = vld [vmem:[%s5 + $0x60] sm:$0xff]
        %v1248 = vld [vmem:[%s5 + $0x68] sm:$0xff]
        %v1249 = vld [vmem:[%s5 + $0x70] sm:$0xff]
        %v1250 = vld [vmem:[%s5 + $0x78] sm:$0xff]
        %v1251 = vld [vmem:[%s5 + $0x80] sm:$0xff]
        %v1252 = vld [vmem:[%s5 + $0x88] sm:$0xff]
        %v1253 = vld [vmem:[%s5 + $0x90] sm:$0xff]
        %v1254 = vld [vmem:[%s5 + $0x98] sm:$0xff]
        %v1255 = vld [vmem:[%s5 + $0xa0] sm:$0xff]
        %v1256 = vld [vmem:[%s5 + $0xa8] sm:$0xff]
        %v1257 = vld [vmem:[%s5 + $0xb0] sm:$0xff]
        %v1258 = vld [vmem:[%s5 + $0xb8] sm:$0xff]
        %v1259 = vld [vmem:[%s5 + $0xc0] sm:$0xff]
        %v1260 = vld [vmem:[%s5 + $0xc8] sm:$0xff]
        %v1261 = vld [vmem:[%s5 + $0xd0] sm:$0xff]
        %v1262 = vld [vmem:[%s5 + $0xd8] sm:$0xff]
        %v1263 = vld [vmem:[%s5 + $0xe0] sm:$0xff]
        %v1264 = vld [vmem:[%s5 + $0xe8] sm:$0xff]
        %v1265 = vld [vmem:[%s5 + $0xf0] sm:$0xff]
        %v1266 = vld [vmem:[%s5 + $0xf8] sm:$0xff]
        %v1267 = vld [vmem:[%s5 + $0x100] sm:$0xff]
        %v1268 = vld [vmem:[%s5 + $0x108] sm:$0xff]
        %v1269 = vld [vmem:[%s5 + $0x110] sm:$0xff]
        %v1270 = vld [vmem:[%s5 + $0x118] sm:$0xff]
        %v1271 = vld [vmem:[%s5 + $0x120] sm:$0xff]
        %v1272 = vld [vmem:[%s5 + $0x128] sm:$0xff]
        %v1273 = vld [vmem:[%s5 + $0x130] sm:$0xff]
        %v1274 = vld [vmem:[%s5 + $0x138] sm:$0xff]
        %v1275 = vld [vmem:[%s5 + $0x140] sm:$0xff]
        %v1276 = vld [vmem:[%s5 + $0x148] sm:$0xff]
        %v1277 = vld [vmem:[%s5 + $0x150] sm:$0xff]
        %v1278 = vld [vmem:[%s5 + $0x158] sm:$0xff]
        %v1279 = vld [vmem:[%s5 + $0x160] sm:$0xff]
        %v1280 = vld [vmem:[%s5 + $0x168] sm:$0xff]
        %v1281 = vld [vmem:[%s5 + $0x170] sm:$0xff]
        %v1282 = vld [vmem:[%s5 + $0x178] sm:$0xff]
        %1284 = vset.pattern.permute.xlu0 0
        %1285 = vperm.xlu0 %1284, %v1235
        %v1286 = vpop.permute.xlu0 %1285
        %1289 = vset.pattern.permute.xlu0 0
        %1290 = vperm.xlu0 %1289, %v1236
        %v1291 = vpop.permute.xlu0 %1290
        %1294 = vset.pattern.permute.xlu0 0
        %1295 = vperm.xlu0 %1294, %v1237
        %v1296 = vpop.permute.xlu0 %1295
        %1299 = vset.pattern.permute.xlu0 0
        %1300 = vperm.xlu0 %1299, %v1238
        %v1301 = vpop.permute.xlu0 %1300
        %1304 = vset.pattern.permute.xlu0 0
        %1305 = vperm.xlu0 %1304, %v1239
        %v1306 = vpop.permute.xlu0 %1305
        %1309 = vset.pattern.permute.xlu0 0
        %1310 = vperm.xlu0 %1309, %v1240
        %v1311 = vpop.permute.xlu0 %1310
        %1314 = vset.pattern.permute.xlu0 0
        %1315 = vperm.xlu0 %1314, %v1241
        %v1316 = vpop.permute.xlu0 %1315
        %1319 = vset.pattern.permute.xlu0 0
        %1320 = vperm.xlu0 %1319, %v1242
        %v1321 = vpop.permute.xlu0 %1320
        %1324 = vset.pattern.permute.xlu0 0
        %1325 = vperm.xlu0 %1324, %v1243
        %v1326 = vpop.permute.xlu0 %1325
        %1329 = vset.pattern.permute.xlu0 0
        %1330 = vperm.xlu0 %1329, %v1244
        %v1331 = vpop.permute.xlu0 %1330
        %1334 = vset.pattern.permute.xlu0 0
        %1335 = vperm.xlu0 %1334, %v1245
        %v1336 = vpop.permute.xlu0 %1335
        %1339 = vset.pattern.permute.xlu0 0
        %1340 = vperm.xlu0 %1339, %v1246
        %v1341 = vpop.permute.xlu0 %1340
        %1344 = vset.pattern.permute.xlu0 0
        %1345 = vperm.xlu0 %1344, %v1247
        %v1346 = vpop.permute.xlu0 %1345
        %1349 = vset.pattern.permute.xlu0 0
        %1350 = vperm.xlu0 %1349, %v1248
        %v1351 = vpop.permute.xlu0 %1350
        %1354 = vset.pattern.permute.xlu0 0
        %1355 = vperm.xlu0 %1354, %v1249
        %v1356 = vpop.permute.xlu0 %1355
        %1359 = vset.pattern.permute.xlu0 0
        %1360 = vperm.xlu0 %1359, %v1250
        %v1361 = vpop.permute.xlu0 %1360
        %1364 = vset.pattern.permute.xlu0 0
        %1365 = vperm.xlu0 %1364, %v1251
        %v1366 = vpop.permute.xlu0 %1365
        %1369 = vset.pattern.permute.xlu0 0
        %1370 = vperm.xlu0 %1369, %v1252
        %v1371 = vpop.permute.xlu0 %1370
        %1374 = vset.pattern.permute.xlu0 0
        %1375 = vperm.xlu0 %1374, %v1253
        %v1376 = vpop.permute.xlu0 %1375
        %1379 = vset.pattern.permute.xlu0 0
        %1380 = vperm.xlu0 %1379, %v1254
        %v1381 = vpop.permute.xlu0 %1380
        %1384 = vset.pattern.permute.xlu0 0
        %1385 = vperm.xlu0 %1384, %v1255
        %v1386 = vpop.permute.xlu0 %1385
        %1389 = vset.pattern.permute.xlu0 0
        %1390 = vperm.xlu0 %1389, %v1256
        %v1391 = vpop.permute.xlu0 %1390
        %1394 = vset.pattern.permute.xlu0 0
        %1395 = vperm.xlu0 %1394, %v1257
        %v1396 = vpop.permute.xlu0 %1395
        %1399 = vset.pattern.permute.xlu0 0
        %1400 = vperm.xlu0 %1399, %v1258
        %v1401 = vpop.permute.xlu0 %1400
        %1404 = vset.pattern.permute.xlu0 0
        %1405 = vperm.xlu0 %1404, %v1259
        %v1406 = vpop.permute.xlu0 %1405
        %1409 = vset.pattern.permute.xlu0 0
        %1410 = vperm.xlu0 %1409, %v1260
        %v1411 = vpop.permute.xlu0 %1410
        %1414 = vset.pattern.permute.xlu0 0
        %1415 = vperm.xlu0 %1414, %v1261
        %v1416 = vpop.permute.xlu0 %1415
        %1419 = vset.pattern.permute.xlu0 0
        %1420 = vperm.xlu0 %1419, %v1262
        %v1421 = vpop.permute.xlu0 %1420
        %1424 = vset.pattern.permute.xlu0 0
        %1425 = vperm.xlu0 %1424, %v1263
        %v1426 = vpop.permute.xlu0 %1425
        %1429 = vset.pattern.permute.xlu0 0
        %1430 = vperm.xlu0 %1429, %v1264
        %v1431 = vpop.permute.xlu0 %1430
        %1434 = vset.pattern.permute.xlu0 0
        %1435 = vperm.xlu0 %1434, %v1265
        %v1436 = vpop.permute.xlu0 %1435
        %1439 = vset.pattern.permute.xlu0 0
        %1440 = vperm.xlu0 %1439, %v1266
        %v1441 = vpop.permute.xlu0 %1440
        %1444 = vset.pattern.permute.xlu0 0
        %1445 = vperm.xlu0 %1444, %v1267
        %v1446 = vpop.permute.xlu0 %1445
        %1449 = vset.pattern.permute.xlu0 0
        %1450 = vperm.xlu0 %1449, %v1268
        %v1451 = vpop.permute.xlu0 %1450
        %1454 = vset.pattern.permute.xlu0 0
        %1455 = vperm.xlu0 %1454, %v1269
        %v1456 = vpop.permute.xlu0 %1455
        %1459 = vset.pattern.permute.xlu0 0
        %1460 = vperm.xlu0 %1459, %v1270
        %v1461 = vpop.permute.xlu0 %1460
        %1464 = vset.pattern.permute.xlu0 0
        %1465 = vperm.xlu0 %1464, %v1271
        %v1466 = vpop.permute.xlu0 %1465
        %1469 = vset.pattern.permute.xlu0 0
        %1470 = vperm.xlu0 %1469, %v1272
        %v1471 = vpop.permute.xlu0 %1470
        %1474 = vset.pattern.permute.xlu0 0
        %1475 = vperm.xlu0 %1474, %v1273
        %v1476 = vpop.permute.xlu0 %1475
        %1479 = vset.pattern.permute.xlu0 0
        %1480 = vperm.xlu0 %1479, %v1274
        %v1481 = vpop.permute.xlu0 %1480
        %1484 = vset.pattern.permute.xlu0 0
        %1485 = vperm.xlu0 %1484, %v1275
        %v1486 = vpop.permute.xlu0 %1485
        %1489 = vset.pattern.permute.xlu0 0
        %1490 = vperm.xlu0 %1489, %v1276
        %v1491 = vpop.permute.xlu0 %1490
        %1494 = vset.pattern.permute.xlu0 0
        %1495 = vperm.xlu0 %1494, %v1277
        %v1496 = vpop.permute.xlu0 %1495
        %1499 = vset.pattern.permute.xlu0 0
        %1500 = vperm.xlu0 %1499, %v1278
        %v1501 = vpop.permute.xlu0 %1500
        %1504 = vset.pattern.permute.xlu0 0
        %1505 = vperm.xlu0 %1504, %v1279
        %v1506 = vpop.permute.xlu0 %1505
        %1509 = vset.pattern.permute.xlu0 0
        %1510 = vperm.xlu0 %1509, %v1280
        %v1511 = vpop.permute.xlu0 %1510
        %1514 = vset.pattern.permute.xlu0 0
        %1515 = vperm.xlu0 %1514, %v1281
        %v1516 = vpop.permute.xlu0 %1515
        %1519 = vset.pattern.permute.xlu0 0
        %1520 = vperm.xlu0 %1519, %v1282
        %v1521 = vpop.permute.xlu0 %1520
        %v1571 = vunpack.c.l.b16 %v1187
        %v1572 = vunpack.c.l.b16 %v1188
        %v1573 = vunpack.c.l.b16 %v1189
        %v1574 = vunpack.c.l.b16 %v1190
        %v1575 = vunpack.c.l.b16 %v1191
        %v1576 = vunpack.c.l.b16 %v1192
        %v1577 = vunpack.c.l.b16 %v1193
        %v1578 = vunpack.c.l.b16 %v1194
        %v1579 = vunpack.c.l.b16 %v1195
        %v1580 = vunpack.c.l.b16 %v1196
        %v1581 = vunpack.c.l.b16 %v1197
        %v1582 = vunpack.c.l.b16 %v1198
        %v1583 = vunpack.c.l.b16 %v1199
        %v1584 = vunpack.c.l.b16 %v1200
        %v1585 = vunpack.c.l.b16 %v1201
        %v1586 = vunpack.c.l.b16 %v1202
        %v1587 = vunpack.c.l.b16 %v1203
        %v1588 = vunpack.c.l.b16 %v1204
        %v1589 = vunpack.c.l.b16 %v1205
        %v1590 = vunpack.c.l.b16 %v1206
        %v1591 = vunpack.c.l.b16 %v1207
        %v1592 = vunpack.c.l.b16 %v1208
        %v1593 = vunpack.c.l.b16 %v1209
        %v1594 = vunpack.c.l.b16 %v1210
        %v1595 = vunpack.c.l.b16 %v1211
        %v1596 = vunpack.c.l.b16 %v1212
        %v1597 = vunpack.c.l.b16 %v1213
        %v1598 = vunpack.c.l.b16 %v1214
        %v1599 = vunpack.c.l.b16 %v1215
        %v1600 = vunpack.c.l.b16 %v1216
        %v1601 = vunpack.c.l.b16 %v1217
        %v1602 = vunpack.c.l.b16 %v1218
        %v1603 = vunpack.c.l.b16 %v1219
        %v1604 = vunpack.c.l.b16 %v1220
        %v1605 = vunpack.c.l.b16 %v1221
        %v1606 = vunpack.c.l.b16 %v1222
        %v1607 = vunpack.c.l.b16 %v1223
        %v1608 = vunpack.c.l.b16 %v1224
        %v1609 = vunpack.c.l.b16 %v1225
        %v1610 = vunpack.c.l.b16 %v1226
        %v1611 = vunpack.c.l.b16 %v1227
        %v1612 = vunpack.c.l.b16 %v1228
        %v1613 = vunpack.c.l.b16 %v1229
        %v1614 = vunpack.c.l.b16 %v1230
        %v1615 = vunpack.c.l.b16 %v1231
        %v1616 = vunpack.c.l.b16 %v1232
        %v1617 = vunpack.c.l.b16 %v1233
        %v1618 = vunpack.c.l.b16 %v1234
        %v1619 = vpack.c.b16 %v1572, %v1571
        %v1620 = vpack.c.b16 %v1574, %v1573
        %v1621 = vpack.c.b16 %v1576, %v1575
        %v1622 = vpack.c.b16 %v1578, %v1577
        %v1623 = vpack.c.b16 %v1580, %v1579
        %v1624 = vpack.c.b16 %v1582, %v1581
        %v1625 = vpack.c.b16 %v1584, %v1583
        %v1626 = vpack.c.b16 %v1586, %v1585
        %v1627 = vpack.c.b16 %v1588, %v1587
        %v1628 = vpack.c.b16 %v1590, %v1589
        %v1629 = vpack.c.b16 %v1592, %v1591
        %v1630 = vpack.c.b16 %v1594, %v1593
        %v1631 = vpack.c.b16 %v1596, %v1595
        %v1632 = vpack.c.b16 %v1598, %v1597
        %v1633 = vpack.c.b16 %v1600, %v1599
        %v1634 = vpack.c.b16 %v1602, %v1601
        %v1635 = vpack.c.b16 %v1604, %v1603
        %v1636 = vpack.c.b16 %v1606, %v1605
        %v1637 = vpack.c.b16 %v1608, %v1607
        %v1638 = vpack.c.b16 %v1610, %v1609
        %v1639 = vpack.c.b16 %v1612, %v1611
        %v1640 = vpack.c.b16 %v1614, %v1613
        %v1641 = vpack.c.b16 %v1616, %v1615
        %v1642 = vpack.c.b16 %v1618, %v1617
        %1667 = vmatpush.bf16.msra.mxu0 %v1185
        %1668 = vmatpush.bf16.msra.mxu0 %v1183
        %1669 = vmatpush.bf16.msra.mxu0 %v1181
        %1670 = vmatpush.bf16.msra.mxu0 %v1179
        %1671 = vmatpush.bf16.msra.mxu0 %v1177
        %1672 = vmatpush.bf16.msra.mxu0 %v1175
        %1673 = vmatpush.bf16.msra.mxu0 %v1173
        %1674 = vmatpush.bf16.msra.mxu0 %v1171
        %1675 = vmatmul.bf16.gmra.mxu0 %v1619
        %v1676 = vpop.f32.mrf.mxu0
        %v1677 = vadd.f32 %v1286, %v1676
        %v1678 = vpop.f32.mrf.mxu0
        %v1679 = vadd.f32 %v1291, %v1678
        %1680 = vmatmul.bf16.gmra.mxu0 %v1620
        %v1681 = vpop.f32.mrf.mxu0
        %v1682 = vadd.f32 %v1296, %v1681
        %v1683 = vpop.f32.mrf.mxu0
        %v1684 = vadd.f32 %v1301, %v1683
        %1685 = vmatmul.bf16.gmra.mxu0 %v1621
        %v1686 = vpop.f32.mrf.mxu0
        %v1687 = vadd.f32 %v1306, %v1686
        %v1688 = vpop.f32.mrf.mxu0
        %v1689 = vadd.f32 %v1311, %v1688
        %1690 = vmatmul.bf16.gmra.mxu0 %v1622
        %v1691 = vpop.f32.mrf.mxu0
        %v1692 = vadd.f32 %v1316, %v1691
        %v1693 = vpop.f32.mrf.mxu0
        %v1694 = vadd.f32 %v1321, %v1693
        %1695 = vmatmul.bf16.gmra.mxu0 %v1623
        %v1696 = vpop.f32.mrf.mxu0
        %v1697 = vadd.f32 %v1326, %v1696
        %v1698 = vpop.f32.mrf.mxu0
        %v1699 = vadd.f32 %v1331, %v1698
        %1700 = vmatmul.bf16.gmra.mxu0 %v1624
        %v1701 = vpop.f32.mrf.mxu0
        %v1702 = vadd.f32 %v1336, %v1701
        %v1703 = vpop.f32.mrf.mxu0
        %v1704 = vadd.f32 %v1341, %v1703
        %1705 = vmatmul.bf16.gmra.mxu0 %v1625
        %v1706 = vpop.f32.mrf.mxu0
        %v1707 = vadd.f32 %v1346, %v1706
        %v1708 = vpop.f32.mrf.mxu0
        %v1709 = vadd.f32 %v1351, %v1708
        %1710 = vmatmul.bf16.gmra.mxu0 %v1626
        %v1711 = vpop.f32.mrf.mxu0
        %v1712 = vadd.f32 %v1356, %v1711
        %v1713 = vpop.f32.mrf.mxu0
        %v1714 = vadd.f32 %v1361, %v1713
        %1715 = vmatmul.bf16.gmra.mxu0 %v1627
        %v1716 = vpop.f32.mrf.mxu0
        %v1717 = vadd.f32 %v1366, %v1716
        %v1718 = vpop.f32.mrf.mxu0
        %v1719 = vadd.f32 %v1371, %v1718
        %1720 = vmatmul.bf16.gmra.mxu0 %v1628
        %v1721 = vpop.f32.mrf.mxu0
        %v1722 = vadd.f32 %v1376, %v1721
        %v1723 = vpop.f32.mrf.mxu0
        %v1724 = vadd.f32 %v1381, %v1723
        %1725 = vmatmul.bf16.gmra.mxu0 %v1629
        %v1726 = vpop.f32.mrf.mxu0
        %v1727 = vadd.f32 %v1386, %v1726
        %v1728 = vpop.f32.mrf.mxu0
        %v1729 = vadd.f32 %v1391, %v1728
        %1730 = vmatmul.bf16.gmra.mxu0 %v1630
        %v1731 = vpop.f32.mrf.mxu0
        %v1732 = vadd.f32 %v1396, %v1731
        %v1733 = vpop.f32.mrf.mxu0
        %v1734 = vadd.f32 %v1401, %v1733
        %1735 = vmatmul.bf16.gmra.mxu0 %v1631
        %v1736 = vpop.f32.mrf.mxu0
        %v1737 = vadd.f32 %v1406, %v1736
        %v1738 = vpop.f32.mrf.mxu0
        %v1739 = vadd.f32 %v1411, %v1738
        %1740 = vmatmul.bf16.gmra.mxu0 %v1632
        %v1741 = vpop.f32.mrf.mxu0
        %v1742 = vadd.f32 %v1416, %v1741
        %v1743 = vpop.f32.mrf.mxu0
        %v1744 = vadd.f32 %v1421, %v1743
        %1745 = vmatmul.bf16.gmra.mxu0 %v1633
        %v1746 = vpop.f32.mrf.mxu0
        %v1747 = vadd.f32 %v1426, %v1746
        %v1748 = vpop.f32.mrf.mxu0
        %v1749 = vadd.f32 %v1431, %v1748
        %1750 = vmatmul.bf16.gmra.mxu0 %v1634
        %v1751 = vpop.f32.mrf.mxu0
        %v1752 = vadd.f32 %v1436, %v1751
        %v1753 = vpop.f32.mrf.mxu0
        %v1754 = vadd.f32 %v1441, %v1753
        %1755 = vmatmul.bf16.gmra.mxu0 %v1635
        %v1756 = vpop.f32.mrf.mxu0
        %v1757 = vadd.f32 %v1446, %v1756
        %v1758 = vpop.f32.mrf.mxu0
        %v1759 = vadd.f32 %v1451, %v1758
        %1760 = vmatmul.bf16.gmra.mxu0 %v1636
        %v1761 = vpop.f32.mrf.mxu0
        %v1762 = vadd.f32 %v1456, %v1761
        %v1763 = vpop.f32.mrf.mxu0
        %v1764 = vadd.f32 %v1461, %v1763
        %1765 = vmatmul.bf16.gmra.mxu0 %v1637
        %v1766 = vpop.f32.mrf.mxu0
        %v1767 = vadd.f32 %v1466, %v1766
        %v1768 = vpop.f32.mrf.mxu0
        %v1769 = vadd.f32 %v1471, %v1768
        %1770 = vmatmul.bf16.gmra.mxu0 %v1638
        %v1771 = vpop.f32.mrf.mxu0
        %v1772 = vadd.f32 %v1476, %v1771
        %v1773 = vpop.f32.mrf.mxu0
        %v1774 = vadd.f32 %v1481, %v1773
        %1775 = vmatmul.bf16.gmra.mxu0 %v1639
        %v1776 = vpop.f32.mrf.mxu0
        %v1777 = vadd.f32 %v1486, %v1776
        %v1778 = vpop.f32.mrf.mxu0
        %v1779 = vadd.f32 %v1491, %v1778
        %1780 = vmatmul.bf16.gmra.mxu0 %v1640
        %v1781 = vpop.f32.mrf.mxu0
        %v1782 = vadd.f32 %v1496, %v1781
        %v1783 = vpop.f32.mrf.mxu0
        %v1784 = vadd.f32 %v1501, %v1783
        %1785 = vmatmul.bf16.gmra.mxu0 %v1641
        %v1786 = vpop.f32.mrf.mxu0
        %v1787 = vadd.f32 %v1506, %v1786
        %v1788 = vpop.f32.mrf.mxu0
        %v1789 = vadd.f32 %v1511, %v1788
        %1790 = vmatmul.bf16.gmra.mxu0 %v1642
        %v1791 = vpop.f32.mrf.mxu0
        %v1792 = vadd.f32 %v1516, %v1791
        %v1793 = vpop.f32.mrf.mxu0
        %v1794 = vadd.f32 %v1521, %v1793
        %1795 = vdwg.mxu0
        %1796 = vmatpush.bf16.msra.mxu0 %v1186
        %1797 = vmatpush.bf16.msra.mxu0 %v1184
        %1798 = vmatpush.bf16.msra.mxu0 %v1182
        %1799 = vmatpush.bf16.msra.mxu0 %v1180
        %1800 = vmatpush.bf16.msra.mxu0 %v1178
        %1801 = vmatpush.bf16.msra.mxu0 %v1176
        %1802 = vmatpush.bf16.msra.mxu0 %v1174
        %1803 = vmatpush.bf16.msra.mxu0 %v1172
        %1804 = vmatmul.bf16.gmra.mxu0 %v1619
        %v1805 = vpop.f32.mrf.mxu0
        %v1806 = vadd.f32 %v1286, %v1805
        %v1807 = vpop.f32.mrf.mxu0
        %v1808 = vadd.f32 %v1291, %v1807
        %1809 = vmatmul.bf16.gmra.mxu0 %v1620
        %v1810 = vpop.f32.mrf.mxu0
        %v1811 = vadd.f32 %v1296, %v1810
        %v1812 = vpop.f32.mrf.mxu0
        %v1813 = vadd.f32 %v1301, %v1812
        %1814 = vmatmul.bf16.gmra.mxu0 %v1621
        %v1815 = vpop.f32.mrf.mxu0
        %v1816 = vadd.f32 %v1306, %v1815
        %v1817 = vpop.f32.mrf.mxu0
        %v1818 = vadd.f32 %v1311, %v1817
        %1819 = vmatmul.bf16.gmra.mxu0 %v1622
        %v1820 = vpop.f32.mrf.mxu0
        %v1821 = vadd.f32 %v1316, %v1820
        %v1822 = vpop.f32.mrf.mxu0
        %v1823 = vadd.f32 %v1321, %v1822
        %1824 = vmatmul.bf16.gmra.mxu0 %v1623
        %v1825 = vpop.f32.mrf.mxu0
        %v1826 = vadd.f32 %v1326, %v1825
        %v1827 = vpop.f32.mrf.mxu0
        %v1828 = vadd.f32 %v1331, %v1827
        %1829 = vmatmul.bf16.gmra.mxu0 %v1624
        %v1830 = vpop.f32.mrf.mxu0
        %v1831 = vadd.f32 %v1336, %v1830
        %v1832 = vpop.f32.mrf.mxu0
        %v1833 = vadd.f32 %v1341, %v1832
        %1834 = vmatmul.bf16.gmra.mxu0 %v1625
        %v1835 = vpop.f32.mrf.mxu0
        %v1836 = vadd.f32 %v1346, %v1835
        %v1837 = vpop.f32.mrf.mxu0
        %v1838 = vadd.f32 %v1351, %v1837
        %1839 = vmatmul.bf16.gmra.mxu0 %v1626
        %v1840 = vpop.f32.mrf.mxu0
        %v1841 = vadd.f32 %v1356, %v1840
        %v1842 = vpop.f32.mrf.mxu0
        %v1843 = vadd.f32 %v1361, %v1842
        %1844 = vmatmul.bf16.gmra.mxu0 %v1627
        %v1845 = vpop.f32.mrf.mxu0
        %v1846 = vadd.f32 %v1366, %v1845
        %v1847 = vpop.f32.mrf.mxu0
        %v1848 = vadd.f32 %v1371, %v1847
        %1849 = vmatmul.bf16.gmra.mxu0 %v1628
        %v1850 = vpop.f32.mrf.mxu0
        %v1851 = vadd.f32 %v1376, %v1850
        %v1852 = vpop.f32.mrf.mxu0
        %v1853 = vadd.f32 %v1381, %v1852
        %1854 = vmatmul.bf16.gmra.mxu0 %v1629
        %v1855 = vpop.f32.mrf.mxu0
        %v1856 = vadd.f32 %v1386, %v1855
        %v1857 = vpop.f32.mrf.mxu0
        %v1858 = vadd.f32 %v1391, %v1857
        %1859 = vmatmul.bf16.gmra.mxu0 %v1630
        %v1860 = vpop.f32.mrf.mxu0
        %v1861 = vadd.f32 %v1396, %v1860
        %v1862 = vpop.f32.mrf.mxu0
        %v1863 = vadd.f32 %v1401, %v1862
        %1864 = vmatmul.bf16.gmra.mxu0 %v1631
        %v1865 = vpop.f32.mrf.mxu0
        %v1866 = vadd.f32 %v1406, %v1865
        %v1867 = vpop.f32.mrf.mxu0
        %v1868 = vadd.f32 %v1411, %v1867
        %1869 = vmatmul.bf16.gmra.mxu0 %v1632
        %v1870 = vpop.f32.mrf.mxu0
        %v1871 = vadd.f32 %v1416, %v1870
        %v1872 = vpop.f32.mrf.mxu0
        %v1873 = vadd.f32 %v1421, %v1872
        %1874 = vmatmul.bf16.gmra.mxu0 %v1633
        %v1875 = vpop.f32.mrf.mxu0
        %v1876 = vadd.f32 %v1426, %v1875
        %v1877 = vpop.f32.mrf.mxu0
        %v1878 = vadd.f32 %v1431, %v1877
        %1879 = vmatmul.bf16.gmra.mxu0 %v1634
        %v1880 = vpop.f32.mrf.mxu0
        %v1881 = vadd.f32 %v1436, %v1880
        %v1882 = vpop.f32.mrf.mxu0
        %v1883 = vadd.f32 %v1441, %v1882
        %1884 = vmatmul.bf16.gmra.mxu0 %v1635
        %v1885 = vpop.f32.mrf.mxu0
        %v1886 = vadd.f32 %v1446, %v1885
        %v1887 = vpop.f32.mrf.mxu0
        %v1888 = vadd.f32 %v1451, %v1887
        %1889 = vmatmul.bf16.gmra.mxu0 %v1636
        %v1890 = vpop.f32.mrf.mxu0
        %v1891 = vadd.f32 %v1456, %v1890
        %v1892 = vpop.f32.mrf.mxu0
        %v1893 = vadd.f32 %v1461, %v1892
        %1894 = vmatmul.bf16.gmra.mxu0 %v1637
        %v1895 = vpop.f32.mrf.mxu0
        %v1896 = vadd.f32 %v1466, %v1895
        %v1897 = vpop.f32.mrf.mxu0
        %v1898 = vadd.f32 %v1471, %v1897
        %1899 = vmatmul.bf16.gmra.mxu0 %v1638
        %v1900 = vpop.f32.mrf.mxu0
        %v1901 = vadd.f32 %v1476, %v1900
        %v1902 = vpop.f32.mrf.mxu0
        %v1903 = vadd.f32 %v1481, %v1902
        %1904 = vmatmul.bf16.gmra.mxu0 %v1639
        %v1905 = vpop.f32.mrf.mxu0
        %v1906 = vadd.f32 %v1486, %v1905
        %v1907 = vpop.f32.mrf.mxu0
        %v1908 = vadd.f32 %v1491, %v1907
        %1909 = vmatmul.bf16.gmra.mxu0 %v1640
        %v1910 = vpop.f32.mrf.mxu0
        %v1911 = vadd.f32 %v1496, %v1910
        %v1912 = vpop.f32.mrf.mxu0
        %v1913 = vadd.f32 %v1501, %v1912
        %1914 = vmatmul.bf16.gmra.mxu0 %v1641
        %v1915 = vpop.f32.mrf.mxu0
        %v1916 = vadd.f32 %v1506, %v1915
        %v1917 = vpop.f32.mrf.mxu0
        %v1918 = vadd.f32 %v1511, %v1917
        %1919 = vmatmul.bf16.gmra.mxu0 %v1642
        %v1920 = vpop.f32.mrf.mxu0
        %v1921 = vadd.f32 %v1516, %v1920
        %v1922 = vpop.f32.mrf.mxu0
        %v1923 = vadd.f32 %v1521, %v1922
        %1924 = vdwg.mxu0
        %v1925 = vpack.c.bf16 %v1679, %v1677
        %v1926 = vpack.c.bf16 %v1808, %v1806
        %v1927 = vpack.c.bf16 %v1684, %v1682
        %v1928 = vpack.c.bf16 %v1813, %v1811
        %v1929 = vpack.c.bf16 %v1689, %v1687
        %v1930 = vpack.c.bf16 %v1818, %v1816
        %v1931 = vpack.c.bf16 %v1694, %v1692
        %v1932 = vpack.c.bf16 %v1823, %v1821
        %v1933 = vpack.c.bf16 %v1699, %v1697
        %v1934 = vpack.c.bf16 %v1828, %v1826
        %v1935 = vpack.c.bf16 %v1704, %v1702
        %v1936 = vpack.c.bf16 %v1833, %v1831
        %v1937 = vpack.c.bf16 %v1709, %v1707
        %v1938 = vpack.c.bf16 %v1838, %v1836
        %v1939 = vpack.c.bf16 %v1714, %v1712
        %v1940 = vpack.c.bf16 %v1843, %v1841
        %v1941 = vpack.c.bf16 %v1719, %v1717
        %v1942 = vpack.c.bf16 %v1848, %v1846
        %v1943 = vpack.c.bf16 %v1724, %v1722
        %v1944 = vpack.c.bf16 %v1853, %v1851
        %v1945 = vpack.c.bf16 %v1729, %v1727
        %v1946 = vpack.c.bf16 %v1858, %v1856
        %v1947 = vpack.c.bf16 %v1734, %v1732
        %v1948 = vpack.c.bf16 %v1863, %v1861
        %v1949 = vpack.c.bf16 %v1739, %v1737
        %v1950 = vpack.c.bf16 %v1868, %v1866
        %v1951 = vpack.c.bf16 %v1744, %v1742
        %v1952 = vpack.c.bf16 %v1873, %v1871
        %v1953 = vpack.c.bf16 %v1749, %v1747
        %v1954 = vpack.c.bf16 %v1878, %v1876
        %v1955 = vpack.c.bf16 %v1754, %v1752
        %v1956 = vpack.c.bf16 %v1883, %v1881
        %v1957 = vpack.c.bf16 %v1759, %v1757
        %v1958 = vpack.c.bf16 %v1888, %v1886
        %v1959 = vpack.c.bf16 %v1764, %v1762
        %v1960 = vpack.c.bf16 %v1893, %v1891
        %v1961 = vpack.c.bf16 %v1769, %v1767
        %v1962 = vpack.c.bf16 %v1898, %v1896
        %v1963 = vpack.c.bf16 %v1774, %v1772
        %v1964 = vpack.c.bf16 %v1903, %v1901
        %v1965 = vpack.c.bf16 %v1779, %v1777
        %v1966 = vpack.c.bf16 %v1908, %v1906
        %v1967 = vpack.c.bf16 %v1784, %v1782
        %v1968 = vpack.c.bf16 %v1913, %v1911
        %v1969 = vpack.c.bf16 %v1789, %v1787
        %v1970 = vpack.c.bf16 %v1918, %v1916
        %v1971 = vpack.c.bf16 %v1794, %v1792
        %v1972 = vpack.c.bf16 %v1923, %v1921
        %1973 = vxpose.binary.xlu0.c.b16.start [1/16] %v1926, %v1925, 128
        %1974 = vxpose.binary.xlu0.c.b16.cont [2/16] %v1928, %v1927, 128
        %1975 = vxpose.binary.xlu0.c.b16.cont [3/16] %v1930, %v1929, 128
        %1976 = vxpose.binary.xlu0.c.b16.cont [4/16] %v1932, %v1931, 128
        %1977 = vxpose.binary.xlu0.c.b16.cont [5/16] %v1934, %v1933, 128
        %1978 = vxpose.binary.xlu0.c.b16.cont [6/16] %v1936, %v1935, 128
        %1979 = vxpose.binary.xlu0.c.b16.cont [7/16] %v1938, %v1937, 128
        %1980 = vxpose.binary.xlu0.c.b16.end [8/16] %v1940, %v1939, 128
        %v1981 = vpop.trf.xlu0
        %v1982 = vpop.trf.xlu0
        %v1983 = vpop.trf.xlu0
        %v1984 = vpop.trf.xlu0
        %v1985 = vpop.trf.xlu0
        %v1986 = vpop.trf.xlu0
        %v1987 = vpop.trf.xlu0
        %v1988 = vpop.trf.xlu0
        %v1989 = vpop.trf.xlu0
        %v1990 = vpop.trf.xlu0
        %v1991 = vpop.trf.xlu0
        %v1992 = vpop.trf.xlu0
        %v1993 = vpop.trf.xlu0
        %v1994 = vpop.trf.xlu0
        %v1995 = vpop.trf.xlu0
        %v1996 = vpop.trf.xlu0
        %1997 = vmatpush.bf16.msra.mxu0 %v1955
        %1998 = vmatpush.bf16.msra.mxu0 %v1953
        %1999 = vmatpush.bf16.msra.mxu0 %v1951
        %2000 = vmatpush.bf16.msra.mxu0 %v1949
        %2001 = vmatpush.bf16.msra.mxu0 %v1947
        %2002 = vmatpush.bf16.msra.mxu0 %v1945
        %2003 = vmatpush.bf16.msra.mxu0 %v1943
        %2004 = vmatpush.bf16.msra.mxu0 %v1941
        %2005 = vmatmul.bf16.gmra.mxu0 %v1981
        %v2006 = vpop.f32.mrf.mxu0
        %v2007 = vadd.f32 0.0, %v2006
        %v2008 = vpop.f32.mrf.mxu0
        %v2009 = vadd.f32 0.0, %v2008
        %2010 = vmatmul.bf16.gmra.mxu0 %v1983
        %v2011 = vpop.f32.mrf.mxu0
        %v2012 = vadd.f32 0.0, %v2011
        %v2013 = vpop.f32.mrf.mxu0
        %v2014 = vadd.f32 0.0, %v2013
        %2015 = vmatmul.bf16.gmra.mxu0 %v1985
        %v2016 = vpop.f32.mrf.mxu0
        %v2017 = vadd.f32 0.0, %v2016
        %v2018 = vpop.f32.mrf.mxu0
        %v2019 = vadd.f32 0.0, %v2018
        %2020 = vmatmul.bf16.gmra.mxu0 %v1987
        %v2021 = vpop.f32.mrf.mxu0
        %v2022 = vadd.f32 0.0, %v2021
        %v2023 = vpop.f32.mrf.mxu0
        %v2024 = vadd.f32 0.0, %v2023
        %2025 = vmatmul.bf16.gmra.mxu0 %v1989
        %v2026 = vpop.f32.mrf.mxu0
        %v2027 = vadd.f32 0.0, %v2026
        %v2028 = vpop.f32.mrf.mxu0
        %v2029 = vadd.f32 0.0, %v2028
        %2030 = vmatmul.bf16.gmra.mxu0 %v1991
        %v2031 = vpop.f32.mrf.mxu0
        %v2032 = vadd.f32 0.0, %v2031
        %v2033 = vpop.f32.mrf.mxu0
        %v2034 = vadd.f32 0.0, %v2033
        %2035 = vmatmul.bf16.gmra.mxu0 %v1993
        %v2036 = vpop.f32.mrf.mxu0
        %v2037 = vadd.f32 0.0, %v2036
        %v2038 = vpop.f32.mrf.mxu0
        %v2039 = vadd.f32 0.0, %v2038
        %2040 = vmatmul.bf16.gmra.mxu0 %v1995
        %v2041 = vpop.f32.mrf.mxu0
        %v2042 = vadd.f32 0.0, %v2041
        %v2043 = vpop.f32.mrf.mxu0
        %v2044 = vadd.f32 0.0, %v2043
        %2045 = vmatmul.bf16.gmra.mxu0 %v1982
        %v2046 = vpop.f32.mrf.mxu0
        %v2047 = vadd.f32 0.0, %v2046
        %v2048 = vpop.f32.mrf.mxu0
        %v2049 = vadd.f32 0.0, %v2048
        %2050 = vmatmul.bf16.gmra.mxu0 %v1984
        %v2051 = vpop.f32.mrf.mxu0
        %v2052 = vadd.f32 0.0, %v2051
        %v2053 = vpop.f32.mrf.mxu0
        %v2054 = vadd.f32 0.0, %v2053
        %2055 = vmatmul.bf16.gmra.mxu0 %v1986
        %v2056 = vpop.f32.mrf.mxu0
        %v2057 = vadd.f32 0.0, %v2056
        %v2058 = vpop.f32.mrf.mxu0
        %v2059 = vadd.f32 0.0, %v2058
        %2060 = vmatmul.bf16.gmra.mxu0 %v1988
        %v2061 = vpop.f32.mrf.mxu0
        %v2062 = vadd.f32 0.0, %v2061
        %v2063 = vpop.f32.mrf.mxu0
        %v2064 = vadd.f32 0.0, %v2063
        %2065 = vmatmul.bf16.gmra.mxu0 %v1990
        %v2066 = vpop.f32.mrf.mxu0
        %v2067 = vadd.f32 0.0, %v2066
        %v2068 = vpop.f32.mrf.mxu0
        %v2069 = vadd.f32 0.0, %v2068
        %2070 = vmatmul.bf16.gmra.mxu0 %v1992
        %v2071 = vpop.f32.mrf.mxu0
        %v2072 = vadd.f32 0.0, %v2071
        %v2073 = vpop.f32.mrf.mxu0
        %v2074 = vadd.f32 0.0, %v2073
        %2075 = vmatmul.bf16.gmra.mxu0 %v1994
        %v2076 = vpop.f32.mrf.mxu0
        %v2077 = vadd.f32 0.0, %v2076
        %v2078 = vpop.f32.mrf.mxu0
        %v2079 = vadd.f32 0.0, %v2078
        %2080 = vmatmul.bf16.gmra.mxu0 %v1996
        %v2081 = vpop.f32.mrf.mxu0
        %v2082 = vadd.f32 0.0, %v2081
        %v2083 = vpop.f32.mrf.mxu0
        %v2084 = vadd.f32 0.0, %v2083
        %2085 = vdwg.mxu0
        %2086 = vmatpush.bf16.msra.mxu0 %v1956
        %2087 = vmatpush.bf16.msra.mxu0 %v1954
        %2088 = vmatpush.bf16.msra.mxu0 %v1952
        %2089 = vmatpush.bf16.msra.mxu0 %v1950
        %2090 = vmatpush.bf16.msra.mxu0 %v1948
        %2091 = vmatpush.bf16.msra.mxu0 %v1946
        %2092 = vmatpush.bf16.msra.mxu0 %v1944
        %2093 = vmatpush.bf16.msra.mxu0 %v1942
        %2094 = vmatmul.bf16.gmra.mxu0 %v1981
        %v2095 = vpop.f32.mrf.mxu0
        %v2096 = vadd.f32 0.0, %v2095
        %v2097 = vpop.f32.mrf.mxu0
        %v2098 = vadd.f32 0.0, %v2097
        %2099 = vmatmul.bf16.gmra.mxu0 %v1983
        %v2100 = vpop.f32.mrf.mxu0
        %v2101 = vadd.f32 0.0, %v2100
        %v2102 = vpop.f32.mrf.mxu0
        %v2103 = vadd.f32 0.0, %v2102
        %2104 = vmatmul.bf16.gmra.mxu0 %v1985
        %v2105 = vpop.f32.mrf.mxu0
        %v2106 = vadd.f32 0.0, %v2105
        %v2107 = vpop.f32.mrf.mxu0
        %v2108 = vadd.f32 0.0, %v2107
        %2109 = vmatmul.bf16.gmra.mxu0 %v1987
        %v2110 = vpop.f32.mrf.mxu0
        %v2111 = vadd.f32 0.0, %v2110
        %v2112 = vpop.f32.mrf.mxu0
        %v2113 = vadd.f32 0.0, %v2112
        %2114 = vmatmul.bf16.gmra.mxu0 %v1989
        %v2115 = vpop.f32.mrf.mxu0
        %v2116 = vadd.f32 0.0, %v2115
        %v2117 = vpop.f32.mrf.mxu0
        %v2118 = vadd.f32 0.0, %v2117
        %2119 = vmatmul.bf16.gmra.mxu0 %v1991
        %v2120 = vpop.f32.mrf.mxu0
        %v2121 = vadd.f32 0.0, %v2120
        %v2122 = vpop.f32.mrf.mxu0
        %v2123 = vadd.f32 0.0, %v2122
        %2124 = vmatmul.bf16.gmra.mxu0 %v1993
        %v2125 = vpop.f32.mrf.mxu0
        %v2126 = vadd.f32 0.0, %v2125
        %v2127 = vpop.f32.mrf.mxu0
        %v2128 = vadd.f32 0.0, %v2127
        %2129 = vmatmul.bf16.gmra.mxu0 %v1995
        %v2130 = vpop.f32.mrf.mxu0
        %v2131 = vadd.f32 0.0, %v2130
        %v2132 = vpop.f32.mrf.mxu0
        %v2133 = vadd.f32 0.0, %v2132
        %2134 = vmatmul.bf16.gmra.mxu0 %v1982
        %v2135 = vpop.f32.mrf.mxu0
        %v2136 = vadd.f32 0.0, %v2135
        %v2137 = vpop.f32.mrf.mxu0
        %v2138 = vadd.f32 0.0, %v2137
        %2139 = vmatmul.bf16.gmra.mxu0 %v1984
        %v2140 = vpop.f32.mrf.mxu0
        %v2141 = vadd.f32 0.0, %v2140
        %v2142 = vpop.f32.mrf.mxu0
        %v2143 = vadd.f32 0.0, %v2142
        %2144 = vmatmul.bf16.gmra.mxu0 %v1986
        %v2145 = vpop.f32.mrf.mxu0
        %v2146 = vadd.f32 0.0, %v2145
        %v2147 = vpop.f32.mrf.mxu0
        %v2148 = vadd.f32 0.0, %v2147
        %2149 = vmatmul.bf16.gmra.mxu0 %v1988
        %v2150 = vpop.f32.mrf.mxu0
        %v2151 = vadd.f32 0.0, %v2150
        %v2152 = vpop.f32.mrf.mxu0
        %v2153 = vadd.f32 0.0, %v2152
        %2154 = vmatmul.bf16.gmra.mxu0 %v1990
        %v2155 = vpop.f32.mrf.mxu0
        %v2156 = vadd.f32 0.0, %v2155
        %v2157 = vpop.f32.mrf.mxu0
        %v2158 = vadd.f32 0.0, %v2157
        %2159 = vmatmul.bf16.gmra.mxu0 %v1992
        %v2160 = vpop.f32.mrf.mxu0
        %v2161 = vadd.f32 0.0, %v2160
        %v2162 = vpop.f32.mrf.mxu0
        %v2163 = vadd.f32 0.0, %v2162
        %2164 = vmatmul.bf16.gmra.mxu0 %v1994
        %v2165 = vpop.f32.mrf.mxu0
        %v2166 = vadd.f32 0.0, %v2165
        %v2167 = vpop.f32.mrf.mxu0
        %v2168 = vadd.f32 0.0, %v2167
        %2169 = vmatmul.bf16.gmra.mxu0 %v1996
        %v2170 = vpop.f32.mrf.mxu0
        %v2171 = vadd.f32 0.0, %v2170
        %v2172 = vpop.f32.mrf.mxu0
        %v2173 = vadd.f32 0.0, %v2172
        %2174 = vdwg.mxu0
        %v2175 = vmax.f32 %v2007, %v2096
        %2176 = vmax.xlane.f32.xlu0 %v2175
        %v2177 = vpop.xlane.xlu0 %2176
        %v2178 = vmax.f32 %v2009, %v2098
        %2179 = vmax.xlane.f32.xlu0 %v2178
        %v2180 = vpop.xlane.xlu0 %2179
        %v2181 = vmax.f32 %v2012, %v2101
        %2182 = vmax.xlane.f32.xlu0 %v2181
        %v2183 = vpop.xlane.xlu0 %2182
        %v2184 = vmax.f32 %v2014, %v2103
        %2185 = vmax.xlane.f32.xlu0 %v2184
        %v2186 = vpop.xlane.xlu0 %2185
        %v2187 = vmax.f32 %v2017, %v2106
        %2188 = vmax.xlane.f32.xlu0 %v2187
        %v2189 = vpop.xlane.xlu0 %2188
        %v2190 = vmax.f32 %v2019, %v2108
        %2191 = vmax.xlane.f32.xlu0 %v2190
        %v2192 = vpop.xlane.xlu0 %2191
        %v2193 = vmax.f32 %v2022, %v2111
        %2194 = vmax.xlane.f32.xlu0 %v2193
        %v2195 = vpop.xlane.xlu0 %2194
        %v2196 = vmax.f32 %v2024, %v2113
        %2197 = vmax.xlane.f32.xlu0 %v2196
        %v2198 = vpop.xlane.xlu0 %2197
        %v2199 = vmax.f32 %v2027, %v2116
        %2200 = vmax.xlane.f32.xlu0 %v2199
        %v2201 = vpop.xlane.xlu0 %2200
        %v2202 = vmax.f32 %v2029, %v2118
        %2203 = vmax.xlane.f32.xlu0 %v2202
        %v2204 = vpop.xlane.xlu0 %2203
        %v2205 = vmax.f32 %v2032, %v2121
        %2206 = vmax.xlane.f32.xlu0 %v2205
        %v2207 = vpop.xlane.xlu0 %2206
        %v2208 = vmax.f32 %v2034, %v2123
        %2209 = vmax.xlane.f32.xlu0 %v2208
        %v2210 = vpop.xlane.xlu0 %2209
        %v2211 = vmax.f32 %v2037, %v2126
        %2212 = vmax.xlane.f32.xlu0 %v2211
        %v2213 = vpop.xlane.xlu0 %2212
        %v2214 = vmax.f32 %v2039, %v2128
        %2215 = vmax.xlane.f32.xlu0 %v2214
        %v2216 = vpop.xlane.xlu0 %2215
        %v2217 = vmax.f32 %v2042, %v2131
        %2218 = vmax.xlane.f32.xlu0 %v2217
        %v2219 = vpop.xlane.xlu0 %2218
        %v2220 = vmax.f32 %v2044, %v2133
        %2221 = vmax.xlane.f32.xlu0 %v2220
        %v2222 = vpop.xlane.xlu0 %2221
        %v2223 = vmax.f32 %v2047, %v2136
        %2224 = vmax.xlane.f32.xlu0 %v2223
        %v2225 = vpop.xlane.xlu0 %2224
        %v2226 = vmax.f32 %v2049, %v2138
        %2227 = vmax.xlane.f32.xlu0 %v2226
        %v2228 = vpop.xlane.xlu0 %2227
        %v2229 = vmax.f32 %v2052, %v2141
        %2230 = vmax.xlane.f32.xlu0 %v2229
        %v2231 = vpop.xlane.xlu0 %2230
        %v2232 = vmax.f32 %v2054, %v2143
        %2233 = vmax.xlane.f32.xlu0 %v2232
        %v2234 = vpop.xlane.xlu0 %2233
        %v2235 = vmax.f32 %v2057, %v2146
        %2236 = vmax.xlane.f32.xlu0 %v2235
        %v2237 = vpop.xlane.xlu0 %2236
        %v2238 = vmax.f32 %v2059, %v2148
        %2239 = vmax.xlane.f32.xlu0 %v2238
        %v2240 = vpop.xlane.xlu0 %2239
        %v2241 = vmax.f32 %v2062, %v2151
        %2242 = vmax.xlane.f32.xlu0 %v2241
        %v2243 = vpop.xlane.xlu0 %2242
        %v2244 = vmax.f32 %v2064, %v2153
        %2245 = vmax.xlane.f32.xlu0 %v2244
        %v2246 = vpop.xlane.xlu0 %2245
        %v2247 = vmax.f32 %v2067, %v2156
        %2248 = vmax.xlane.f32.xlu0 %v2247
        %v2249 = vpop.xlane.xlu0 %2248
        %v2250 = vmax.f32 %v2069, %v2158
        %2251 = vmax.xlane.f32.xlu0 %v2250
        %v2252 = vpop.xlane.xlu0 %2251
        %v2253 = vmax.f32 %v2072, %v2161
        %2254 = vmax.xlane.f32.xlu0 %v2253
        %v2255 = vpop.xlane.xlu0 %2254
        %v2256 = vmax.f32 %v2074, %v2163
        %2257 = vmax.xlane.f32.xlu0 %v2256
        %v2258 = vpop.xlane.xlu0 %2257
        %v2259 = vmax.f32 %v2077, %v2166
        %2260 = vmax.xlane.f32.xlu0 %v2259
        %v2261 = vpop.xlane.xlu0 %2260
        %v2262 = vmax.f32 %v2079, %v2168
        %2263 = vmax.xlane.f32.xlu0 %v2262
        %v2264 = vpop.xlane.xlu0 %2263
        %v2265 = vmax.f32 %v2082, %v2171
        %2266 = vmax.xlane.f32.xlu0 %v2265
        %v2267 = vpop.xlane.xlu0 %2266
        %v2268 = vmax.f32 %v2084, %v2173
        %2269 = vmax.xlane.f32.xlu0 %v2268
        %v2270 = vpop.xlane.xlu0 %2269
        %v2271 = vsub.f32 %v2007, %v2177
        %v2272 = vsub.f32 %v2096, %v2177
        %v2273 = vsub.f32 %v2009, %v2180
        %v2274 = vsub.f32 %v2098, %v2180
        %v2275 = vsub.f32 %v2012, %v2183
        %v2276 = vsub.f32 %v2101, %v2183
        %v2277 = vsub.f32 %v2014, %v2186
        %v2278 = vsub.f32 %v2103, %v2186
        %v2279 = vsub.f32 %v2017, %v2189
        %v2280 = vsub.f32 %v2106, %v2189
        %v2281 = vsub.f32 %v2019, %v2192
        %v2282 = vsub.f32 %v2108, %v2192
        %v2283 = vsub.f32 %v2022, %v2195
        %v2284 = vsub.f32 %v2111, %v2195
        %v2285 = vsub.f32 %v2024, %v2198
        %v2286 = vsub.f32 %v2113, %v2198
        %v2287 = vsub.f32 %v2027, %v2201
        %v2288 = vsub.f32 %v2116, %v2201
        %v2289 = vsub.f32 %v2029, %v2204
        %v2290 = vsub.f32 %v2118, %v2204
        %v2291 = vsub.f32 %v2032, %v2207
        %v2292 = vsub.f32 %v2121, %v2207
        %v2293 = vsub.f32 %v2034, %v2210
        %v2294 = vsub.f32 %v2123, %v2210
        %v2295 = vsub.f32 %v2037, %v2213
        %v2296 = vsub.f32 %v2126, %v2213
        %v2297 = vsub.f32 %v2039, %v2216
        %v2298 = vsub.f32 %v2128, %v2216
        %v2299 = vsub.f32 %v2042, %v2219
        %v2300 = vsub.f32 %v2131, %v2219
        %v2301 = vsub.f32 %v2044, %v2222
        %v2302 = vsub.f32 %v2133, %v2222
        %v2303 = vsub.f32 %v2047, %v2225
        %v2304 = vsub.f32 %v2136, %v2225
        %v2305 = vsub.f32 %v2049, %v2228
        %v2306 = vsub.f32 %v2138, %v2228
        %v2307 = vsub.f32 %v2052, %v2231
        %v2308 = vsub.f32 %v2141, %v2231
        %v2309 = vsub.f32 %v2054, %v2234
        %v2310 = vsub.f32 %v2143, %v2234
        %v2311 = vsub.f32 %v2057, %v2237
        %v2312 = vsub.f32 %v2146, %v2237
        %v2313 = vsub.f32 %v2059, %v2240
        %v2314 = vsub.f32 %v2148, %v2240
        %v2315 = vsub.f32 %v2062, %v2243
        %v2316 = vsub.f32 %v2151, %v2243
        %v2317 = vsub.f32 %v2064, %v2246
        %v2318 = vsub.f32 %v2153, %v2246
        %v2319 = vsub.f32 %v2067, %v2249
        %v2320 = vsub.f32 %v2156, %v2249
        %v2321 = vsub.f32 %v2069, %v2252
        %v2322 = vsub.f32 %v2158, %v2252
        %v2323 = vsub.f32 %v2072, %v2255
        %v2324 = vsub.f32 %v2161, %v2255
        %v2325 = vsub.f32 %v2074, %v2258
        %v2326 = vsub.f32 %v2163, %v2258
        %v2327 = vsub.f32 %v2077, %v2261
        %v2328 = vsub.f32 %v2166, %v2261
        %v2329 = vsub.f32 %v2079, %v2264
        %v2330 = vsub.f32 %v2168, %v2264
        %v2331 = vsub.f32 %v2082, %v2267
        %v2332 = vsub.f32 %v2171, %v2267
        %v2333 = vsub.f32 %v2084, %v2270
        %v2334 = vsub.f32 %v2173, %v2270
        %v2335 = vmul.f32 %v2271, 1.442695
        %v2336 = vpow.pop %v2335
        %v2337 = vmul.f32 %v2272, 1.442695
        %v2338 = vpow.pop %v2337
        %v2339 = vmul.f32 %v2273, 1.442695
        %v2340 = vpow.pop %v2339
        %v2341 = vmul.f32 %v2274, 1.442695
        %v2342 = vpow.pop %v2341
        %v2343 = vmul.f32 %v2275, 1.442695
        %v2344 = vpow.pop %v2343
        %v2345 = vmul.f32 %v2276, 1.442695
        %v2346 = vpow.pop %v2345
        %v2347 = vmul.f32 %v2277, 1.442695
        %v2348 = vpow.pop %v2347
        %v2349 = vmul.f32 %v2278, 1.442695
        %v2350 = vpow.pop %v2349
        %v2351 = vmul.f32 %v2279, 1.442695
        %v2352 = vpow.pop %v2351
        %v2353 = vmul.f32 %v2280, 1.442695
        %v2354 = vpow.pop %v2353
        %v2355 = vmul.f32 %v2281, 1.442695
        %v2356 = vpow.pop %v2355
        %v2357 = vmul.f32 %v2282, 1.442695
        %v2358 = vpow.pop %v2357
        %v2359 = vmul.f32 %v2283, 1.442695
        %v2360 = vpow.pop %v2359
        %v2361 = vmul.f32 %v2284, 1.442695
        %v2362 = vpow.pop %v2361
        %v2363 = vmul.f32 %v2285, 1.442695
        %v2364 = vpow.pop %v2363
        %v2365 = vmul.f32 %v2286, 1.442695
        %v2366 = vpow.pop %v2365
        %v2367 = vmul.f32 %v2287, 1.442695
        %v2368 = vpow.pop %v2367
        %v2369 = vmul.f32 %v2288, 1.442695
        %v2370 = vpow.pop %v2369
        %v2371 = vmul.f32 %v2289, 1.442695
        %v2372 = vpow.pop %v2371
        %v2373 = vmul.f32 %v2290, 1.442695
        %v2374 = vpow.pop %v2373
        %v2375 = vmul.f32 %v2291, 1.442695
        %v2376 = vpow.pop %v2375
        %v2377 = vmul.f32 %v2292, 1.442695
        %v2378 = vpow.pop %v2377
        %v2379 = vmul.f32 %v2293, 1.442695
        %v2380 = vpow.pop %v2379
        %v2381 = vmul.f32 %v2294, 1.442695
        %v2382 = vpow.pop %v2381
        %v2383 = vmul.f32 %v2295, 1.442695
        %v2384 = vpow.pop %v2383
        %v2385 = vmul.f32 %v2296, 1.442695
        %v2386 = vpow.pop %v2385
        %v2387 = vmul.f32 %v2297, 1.442695
        %v2388 = vpow.pop %v2387
        %v2389 = vmul.f32 %v2298, 1.442695
        %v2390 = vpow.pop %v2389
        %v2391 = vmul.f32 %v2299, 1.442695
        %v2392 = vpow.pop %v2391
        %v2393 = vmul.f32 %v2300, 1.442695
        %v2394 = vpow.pop %v2393
        %v2395 = vmul.f32 %v2301, 1.442695
        %v2396 = vpow.pop %v2395
        %v2397 = vmul.f32 %v2302, 1.442695
        %v2398 = vpow.pop %v2397
        %v2399 = vmul.f32 %v2303, 1.442695
        %v2400 = vpow.pop %v2399
        %v2401 = vmul.f32 %v2304, 1.442695
        %v2402 = vpow.pop %v2401
        %v2403 = vmul.f32 %v2305, 1.442695
        %v2404 = vpow.pop %v2403
        %v2405 = vmul.f32 %v2306, 1.442695
        %v2406 = vpow.pop %v2405
        %v2407 = vmul.f32 %v2307, 1.442695
        %v2408 = vpow.pop %v2407
        %v2409 = vmul.f32 %v2308, 1.442695
        %v2410 = vpow.pop %v2409
        %v2411 = vmul.f32 %v2309, 1.442695
        %v2412 = vpow.pop %v2411
        %v2413 = vmul.f32 %v2310, 1.442695
        %v2414 = vpow.pop %v2413
        %v2415 = vmul.f32 %v2311, 1.442695
        %v2416 = vpow.pop %v2415
        %v2417 = vmul.f32 %v2312, 1.442695
        %v2418 = vpow.pop %v2417
        %v2419 = vmul.f32 %v2313, 1.442695
        %v2420 = vpow.pop %v2419
        %v2421 = vmul.f32 %v2314, 1.442695
        %v2422 = vpow.pop %v2421
        %v2423 = vmul.f32 %v2315, 1.442695
        %v2424 = vpow.pop %v2423
        %v2425 = vmul.f32 %v2316, 1.442695
        %v2426 = vpow.pop %v2425
        %v2427 = vmul.f32 %v2317, 1.442695
        %v2428 = vpow.pop %v2427
        %v2429 = vmul.f32 %v2318, 1.442695
        %v2430 = vpow.pop %v2429
        %v2431 = vmul.f32 %v2319, 1.442695
        %v2432 = vpow.pop %v2431
        %v2433 = vmul.f32 %v2320, 1.442695
        %v2434 = vpow.pop %v2433
        %v2435 = vmul.f32 %v2321, 1.442695
        %v2436 = vpow.pop %v2435
        %v2437 = vmul.f32 %v2322, 1.442695
        %v2438 = vpow.pop %v2437
        %v2439 = vmul.f32 %v2323, 1.442695
        %v2440 = vpow.pop %v2439
        %v2441 = vmul.f32 %v2324, 1.442695
        %v2442 = vpow.pop %v2441
        %v2443 = vmul.f32 %v2325, 1.442695
        %v2444 = vpow.pop %v2443
        %v2445 = vmul.f32 %v2326, 1.442695
        %v2446 = vpow.pop %v2445
        %v2447 = vmul.f32 %v2327, 1.442695
        %v2448 = vpow.pop %v2447
        %v2449 = vmul.f32 %v2328, 1.442695
        %v2450 = vpow.pop %v2449
        %v2451 = vmul.f32 %v2329, 1.442695
        %v2452 = vpow.pop %v2451
        %v2453 = vmul.f32 %v2330, 1.442695
        %v2454 = vpow.pop %v2453
        %v2455 = vmul.f32 %v2331, 1.442695
        %v2456 = vpow.pop %v2455
        %v2457 = vmul.f32 %v2332, 1.442695
        %v2458 = vpow.pop %v2457
        %v2459 = vmul.f32 %v2333, 1.442695
        %v2460 = vpow.pop %v2459
        %v2461 = vmul.f32 %v2334, 1.442695
        %v2462 = vpow.pop %v2461
        %v2463 = vadd.f32 %v2336, %v2338
        %2464 = vadd.xlane.f32.xlu0 %v2463
        %v2465 = vpop.xlane.xlu0 %2464
        %v2466 = vadd.f32 %v2340, %v2342
        %2467 = vadd.xlane.f32.xlu0 %v2466
        %v2468 = vpop.xlane.xlu0 %2467
        %v2469 = vadd.f32 %v2344, %v2346
        %2470 = vadd.xlane.f32.xlu0 %v2469
        %v2471 = vpop.xlane.xlu0 %2470
        %v2472 = vadd.f32 %v2348, %v2350
        %2473 = vadd.xlane.f32.xlu0 %v2472
        %v2474 = vpop.xlane.xlu0 %2473
        %v2475 = vadd.f32 %v2352, %v2354
        %2476 = vadd.xlane.f32.xlu0 %v2475
        %v2477 = vpop.xlane.xlu0 %2476
        %v2478 = vadd.f32 %v2356, %v2358
        %2479 = vadd.xlane.f32.xlu0 %v2478
        %v2480 = vpop.xlane.xlu0 %2479
        %v2481 = vadd.f32 %v2360, %v2362
        %2482 = vadd.xlane.f32.xlu0 %v2481
        %v2483 = vpop.xlane.xlu0 %2482
        %v2484 = vadd.f32 %v2364, %v2366
        %2485 = vadd.xlane.f32.xlu0 %v2484
        %v2486 = vpop.xlane.xlu0 %2485
        %v2487 = vadd.f32 %v2368, %v2370
        %2488 = vadd.xlane.f32.xlu0 %v2487
        %v2489 = vpop.xlane.xlu0 %2488
        %v2490 = vadd.f32 %v2372, %v2374
        %2491 = vadd.xlane.f32.xlu0 %v2490
        %v2492 = vpop.xlane.xlu0 %2491
        %v2493 = vadd.f32 %v2376, %v2378
        %2494 = vadd.xlane.f32.xlu0 %v2493
        %v2495 = vpop.xlane.xlu0 %2494
        %v2496 = vadd.f32 %v2380, %v2382
        %2497 = vadd.xlane.f32.xlu0 %v2496
        %v2498 = vpop.xlane.xlu0 %2497
        %v2499 = vadd.f32 %v2384, %v2386
        %2500 = vadd.xlane.f32.xlu0 %v2499
        %v2501 = vpop.xlane.xlu0 %2500
        %v2502 = vadd.f32 %v2388, %v2390
        %2503 = vadd.xlane.f32.xlu0 %v2502
        %v2504 = vpop.xlane.xlu0 %2503
        %v2505 = vadd.f32 %v2392, %v2394
        %2506 = vadd.xlane.f32.xlu0 %v2505
        %v2507 = vpop.xlane.xlu0 %2506
        %v2508 = vadd.f32 %v2396, %v2398
        %2509 = vadd.xlane.f32.xlu0 %v2508
        %v2510 = vpop.xlane.xlu0 %2509
        %v2511 = vadd.f32 %v2400, %v2402
        %2512 = vadd.xlane.f32.xlu0 %v2511
        %v2513 = vpop.xlane.xlu0 %2512
        %v2514 = vadd.f32 %v2404, %v2406
        %2515 = vadd.xlane.f32.xlu0 %v2514
        %v2516 = vpop.xlane.xlu0 %2515
        %v2517 = vadd.f32 %v2408, %v2410
        %2518 = vadd.xlane.f32.xlu0 %v2517
        %v2519 = vpop.xlane.xlu0 %2518
        %v2520 = vadd.f32 %v2412, %v2414
        %2521 = vadd.xlane.f32.xlu0 %v2520
        %v2522 = vpop.xlane.xlu0 %2521
        %v2523 = vadd.f32 %v2416, %v2418
        %2524 = vadd.xlane.f32.xlu0 %v2523
        %v2525 = vpop.xlane.xlu0 %2524
        %v2526 = vadd.f32 %v2420, %v2422
        %2527 = vadd.xlane.f32.xlu0 %v2526
        %v2528 = vpop.xlane.xlu0 %2527
        %v2529 = vadd.f32 %v2424, %v2426
        %2530 = vadd.xlane.f32.xlu0 %v2529
        %v2531 = vpop.xlane.xlu0 %2530
        %v2532 = vadd.f32 %v2428, %v2430
        %2533 = vadd.xlane.f32.xlu0 %v2532
        %v2534 = vpop.xlane.xlu0 %2533
        %v2535 = vadd.f32 %v2432, %v2434
        %2536 = vadd.xlane.f32.xlu0 %v2535
        %v2537 = vpop.xlane.xlu0 %2536
        %v2538 = vadd.f32 %v2436, %v2438
        %2539 = vadd.xlane.f32.xlu0 %v2538
        %v2540 = vpop.xlane.xlu0 %2539
        %v2541 = vadd.f32 %v2440, %v2442
        %2542 = vadd.xlane.f32.xlu0 %v2541
        %v2543 = vpop.xlane.xlu0 %2542
        %v2544 = vadd.f32 %v2444, %v2446
        %2545 = vadd.xlane.f32.xlu0 %v2544
        %v2546 = vpop.xlane.xlu0 %2545
        %v2547 = vadd.f32 %v2448, %v2450
        %2548 = vadd.xlane.f32.xlu0 %v2547
        %v2549 = vpop.xlane.xlu0 %2548
        %v2550 = vadd.f32 %v2452, %v2454
        %2551 = vadd.xlane.f32.xlu0 %v2550
        %v2552 = vpop.xlane.xlu0 %2551
        %v2553 = vadd.f32 %v2456, %v2458
        %2554 = vadd.xlane.f32.xlu0 %v2553
        %v2555 = vpop.xlane.xlu0 %2554
        %v2556 = vadd.f32 %v2460, %v2462
        %2557 = vadd.xlane.f32.xlu0 %v2556
        %v2558 = vpop.xlane.xlu0 %2557
        %v2559 = vrcp.pop %v2465
        %v2560 = vrcp.pop %v2468
        %v2561 = vrcp.pop %v2471
        %v2562 = vrcp.pop %v2474
        %v2563 = vrcp.pop %v2477
        %v2564 = vrcp.pop %v2480
        %v2565 = vrcp.pop %v2483
        %v2566 = vrcp.pop %v2486
        %v2567 = vrcp.pop %v2489
        %v2568 = vrcp.pop %v2492
        %v2569 = vrcp.pop %v2495
        %v2570 = vrcp.pop %v2498
        %v2571 = vrcp.pop %v2501
        %v2572 = vrcp.pop %v2504
        %v2573 = vrcp.pop %v2507
        %v2574 = vrcp.pop %v2510
        %v2575 = vrcp.pop %v2513
        %v2576 = vrcp.pop %v2516
        %v2577 = vrcp.pop %v2519
        %v2578 = vrcp.pop %v2522
        %v2579 = vrcp.pop %v2525
        %v2580 = vrcp.pop %v2528
        %v2581 = vrcp.pop %v2531
        %v2582 = vrcp.pop %v2534
        %v2583 = vrcp.pop %v2537
        %v2584 = vrcp.pop %v2540
        %v2585 = vrcp.pop %v2543
        %v2586 = vrcp.pop %v2546
        %v2587 = vrcp.pop %v2549
        %v2588 = vrcp.pop %v2552
        %v2589 = vrcp.pop %v2555
        %v2590 = vrcp.pop %v2558
        %v2591 = vmul.f32 %v2336, %v2559
        %v2592 = vmul.f32 %v2338, %v2559
        %v2593 = vmul.f32 %v2340, %v2560
        %v2594 = vmul.f32 %v2342, %v2560
        %v2595 = vmul.f32 %v2344, %v2561
        %v2596 = vmul.f32 %v2346, %v2561
        %v2597 = vmul.f32 %v2348, %v2562
        %v2598 = vmul.f32 %v2350, %v2562
        %v2599 = vmul.f32 %v2352, %v2563
        %v2600 = vmul.f32 %v2354, %v2563
        %v2601 = vmul.f32 %v2356, %v2564
        %v2602 = vmul.f32 %v2358, %v2564
        %v2603 = vmul.f32 %v2360, %v2565
        %v2604 = vmul.f32 %v2362, %v2565
        %v2605 = vmul.f32 %v2364, %v2566
        %v2606 = vmul.f32 %v2366, %v2566
        %v2607 = vmul.f32 %v2368, %v2567
        %v2608 = vmul.f32 %v2370, %v2567
        %v2609 = vmul.f32 %v2372, %v2568
        %v2610 = vmul.f32 %v2374, %v2568
        %v2611 = vmul.f32 %v2376, %v2569
        %v2612 = vmul.f32 %v2378, %v2569
        %v2613 = vmul.f32 %v2380, %v2570
        %v2614 = vmul.f32 %v2382, %v2570
        %v2615 = vmul.f32 %v2384, %v2571
        %v2616 = vmul.f32 %v2386, %v2571
        %v2617 = vmul.f32 %v2388, %v2572
        %v2618 = vmul.f32 %v2390, %v2572
        %v2619 = vmul.f32 %v2392, %v2573
        %v2620 = vmul.f32 %v2394, %v2573
        %v2621 = vmul.f32 %v2396, %v2574
        %v2622 = vmul.f32 %v2398, %v2574
        %v2623 = vmul.f32 %v2400, %v2575
        %v2624 = vmul.f32 %v2402, %v2575
        %v2625 = vmul.f32 %v2404, %v2576
        %v2626 = vmul.f32 %v2406, %v2576
        %v2627 = vmul.f32 %v2408, %v2577
        %v2628 = vmul.f32 %v2410, %v2577
        %v2629 = vmul.f32 %v2412, %v2578
        %v2630 = vmul.f32 %v2414, %v2578
        %v2631 = vmul.f32 %v2416, %v2579
        %v2632 = vmul.f32 %v2418, %v2579
        %v2633 = vmul.f32 %v2420, %v2580
        %v2634 = vmul.f32 %v2422, %v2580
        %v2635 = vmul.f32 %v2424, %v2581
        %v2636 = vmul.f32 %v2426, %v2581
        %v2637 = vmul.f32 %v2428, %v2582
        %v2638 = vmul.f32 %v2430, %v2582
        %v2639 = vmul.f32 %v2432, %v2583
        %v2640 = vmul.f32 %v2434, %v2583
        %v2641 = vmul.f32 %v2436, %v2584
        %v2642 = vmul.f32 %v2438, %v2584
        %v2643 = vmul.f32 %v2440, %v2585
        %v2644 = vmul.f32 %v2442, %v2585
        %v2645 = vmul.f32 %v2444, %v2586
        %v2646 = vmul.f32 %v2446, %v2586
        %v2647 = vmul.f32 %v2448, %v2587
        %v2648 = vmul.f32 %v2450, %v2587
        %v2649 = vmul.f32 %v2452, %v2588
        %v2650 = vmul.f32 %v2454, %v2588
        %v2651 = vmul.f32 %v2456, %v2589
        %v2652 = vmul.f32 %v2458, %v2589
        %v2653 = vmul.f32 %v2460, %v2590
        %v2654 = vmul.f32 %v2462, %v2590
        %v2655 = vpack.c.bf16 %v2593, %v2591
        %v2656 = vpack.c.bf16 %v2594, %v2592
        %v2657 = vpack.c.bf16 %v2597, %v2595
        %v2658 = vpack.c.bf16 %v2598, %v2596
        %v2659 = vpack.c.bf16 %v2601, %v2599
        %v2660 = vpack.c.bf16 %v2602, %v2600
        %v2661 = vpack.c.bf16 %v2605, %v2603
        %v2662 = vpack.c.bf16 %v2606, %v2604
        %v2663 = vpack.c.bf16 %v2609, %v2607
        %v2664 = vpack.c.bf16 %v2610, %v2608
        %v2665 = vpack.c.bf16 %v2613, %v2611
        %v2666 = vpack.c.bf16 %v2614, %v2612
        %v2667 = vpack.c.bf16 %v2617, %v2615
        %v2668 = vpack.c.bf16 %v2618, %v2616
        %v2669 = vpack.c.bf16 %v2621, %v2619
        %v2670 = vpack.c.bf16 %v2622, %v2620
        %v2671 = vpack.c.bf16 %v2625, %v2623
        %v2672 = vpack.c.bf16 %v2626, %v2624
        %v2673 = vpack.c.bf16 %v2629, %v2627
        %v2674 = vpack.c.bf16 %v2630, %v2628
        %v2675 = vpack.c.bf16 %v2633, %v2631
        %v2676 = vpack.c.bf16 %v2634, %v2632
        %v2677 = vpack.c.bf16 %v2637, %v2635
        %v2678 = vpack.c.bf16 %v2638, %v2636
        %v2679 = vpack.c.bf16 %v2641, %v2639
        %v2680 = vpack.c.bf16 %v2642, %v2640
        %v2681 = vpack.c.bf16 %v2645, %v2643
        %v2682 = vpack.c.bf16 %v2646, %v2644
        %v2683 = vpack.c.bf16 %v2649, %v2647
        %v2684 = vpack.c.bf16 %v2650, %v2648
        %v2685 = vpack.c.bf16 %v2653, %v2651
        %v2686 = vpack.c.bf16 %v2654, %v2652
        %2687 = vmatpush.bf16.xpose.msra.mxu0 %v2669
        %2688 = vmatpush.bf16.xpose.msra.mxu0 %v2667
        %2689 = vmatpush.bf16.xpose.msra.mxu0 %v2665
        %2690 = vmatpush.bf16.xpose.msra.mxu0 %v2663
        %2691 = vmatpush.bf16.xpose.msra.mxu0 %v2661
        %2692 = vmatpush.bf16.xpose.msra.mxu0 %v2659
        %2693 = vmatpush.bf16.xpose.msra.mxu0 %v2657
        %2694 = vmatpush.bf16.xpose.msra.mxu0 %v2655
        %2695 = vmatmul.bf16.gmra.mxu0 %v1957
        %v2696 = vpop.f32.mrf.mxu0
        %v2697 = vadd.f32 0.0, %v2696
        %v2698 = vpop.f32.mrf.mxu0
        %v2699 = vadd.f32 0.0, %v2698
        %2700 = vmatmul.bf16.gmra.mxu0 %v1959
        %v2701 = vpop.f32.mrf.mxu0
        %v2702 = vadd.f32 0.0, %v2701
        %v2703 = vpop.f32.mrf.mxu0
        %v2704 = vadd.f32 0.0, %v2703
        %2705 = vmatmul.bf16.gmra.mxu0 %v1961
        %v2706 = vpop.f32.mrf.mxu0
        %v2707 = vadd.f32 0.0, %v2706
        %v2708 = vpop.f32.mrf.mxu0
        %v2709 = vadd.f32 0.0, %v2708
        %2710 = vmatmul.bf16.gmra.mxu0 %v1963
        %v2711 = vpop.f32.mrf.mxu0
        %v2712 = vadd.f32 0.0, %v2711
        %v2713 = vpop.f32.mrf.mxu0
        %v2714 = vadd.f32 0.0, %v2713
        %2715 = vmatmul.bf16.gmra.mxu0 %v1965
        %v2716 = vpop.f32.mrf.mxu0
        %v2717 = vadd.f32 0.0, %v2716
        %v2718 = vpop.f32.mrf.mxu0
        %v2719 = vadd.f32 0.0, %v2718
        %2720 = vmatmul.bf16.gmra.mxu0 %v1967
        %v2721 = vpop.f32.mrf.mxu0
        %v2722 = vadd.f32 0.0, %v2721
        %v2723 = vpop.f32.mrf.mxu0
        %v2724 = vadd.f32 0.0, %v2723
        %2725 = vmatmul.bf16.gmra.mxu0 %v1969
        %v2726 = vpop.f32.mrf.mxu0
        %v2727 = vadd.f32 0.0, %v2726
        %v2728 = vpop.f32.mrf.mxu0
        %v2729 = vadd.f32 0.0, %v2728
        %2730 = vmatmul.bf16.gmra.mxu0 %v1971
        %v2731 = vpop.f32.mrf.mxu0
        %v2732 = vadd.f32 0.0, %v2731
        %v2733 = vpop.f32.mrf.mxu0
        %v2734 = vadd.f32 0.0, %v2733
        %2735 = vdwg.mxu0
        %2736 = vmatpush.bf16.xpose.msra.mxu0 %v2670
        %2737 = vmatpush.bf16.xpose.msra.mxu0 %v2668
        %2738 = vmatpush.bf16.xpose.msra.mxu0 %v2666
        %2739 = vmatpush.bf16.xpose.msra.mxu0 %v2664
        %2740 = vmatpush.bf16.xpose.msra.mxu0 %v2662
        %2741 = vmatpush.bf16.xpose.msra.mxu0 %v2660
        %2742 = vmatpush.bf16.xpose.msra.mxu0 %v2658
        %2743 = vmatpush.bf16.xpose.msra.mxu0 %v2656
        %2744 = vmatmul.bf16.gmra.mxu0 %v1958
        %v2745 = vpop.f32.mrf.mxu0
        %v2746 = vadd.f32 %v2697, %v2745
        %v2747 = vpop.f32.mrf.mxu0
        %v2748 = vadd.f32 %v2699, %v2747
        %2749 = vmatmul.bf16.gmra.mxu0 %v1960
        %v2750 = vpop.f32.mrf.mxu0
        %v2751 = vadd.f32 %v2702, %v2750
        %v2752 = vpop.f32.mrf.mxu0
        %v2753 = vadd.f32 %v2704, %v2752
        %2754 = vmatmul.bf16.gmra.mxu0 %v1962
        %v2755 = vpop.f32.mrf.mxu0
        %v2756 = vadd.f32 %v2707, %v2755
        %v2757 = vpop.f32.mrf.mxu0
        %v2758 = vadd.f32 %v2709, %v2757
        %2759 = vmatmul.bf16.gmra.mxu0 %v1964
        %v2760 = vpop.f32.mrf.mxu0
        %v2761 = vadd.f32 %v2712, %v2760
        %v2762 = vpop.f32.mrf.mxu0
        %v2763 = vadd.f32 %v2714, %v2762
        %2764 = vmatmul.bf16.gmra.mxu0 %v1966
        %v2765 = vpop.f32.mrf.mxu0
        %v2766 = vadd.f32 %v2717, %v2765
        %v2767 = vpop.f32.mrf.mxu0
        %v2768 = vadd.f32 %v2719, %v2767
        %2769 = vmatmul.bf16.gmra.mxu0 %v1968
        %v2770 = vpop.f32.mrf.mxu0
        %v2771 = vadd.f32 %v2722, %v2770
        %v2772 = vpop.f32.mrf.mxu0
        %v2773 = vadd.f32 %v2724, %v2772
        %2774 = vmatmul.bf16.gmra.mxu0 %v1970
        %v2775 = vpop.f32.mrf.mxu0
        %v2776 = vadd.f32 %v2727, %v2775
        %v2777 = vpop.f32.mrf.mxu0
        %v2778 = vadd.f32 %v2729, %v2777
        %2779 = vmatmul.bf16.gmra.mxu0 %v1972
        %v2780 = vpop.f32.mrf.mxu0
        %v2781 = vadd.f32 %v2732, %v2780
        %v2782 = vpop.f32.mrf.mxu0
        %v2783 = vadd.f32 %v2734, %v2782
        %2784 = vdwg.mxu0
        %2785 = vmatpush.bf16.xpose.msra.mxu0 %v2685
        %2786 = vmatpush.bf16.xpose.msra.mxu0 %v2683
        %2787 = vmatpush.bf16.xpose.msra.mxu0 %v2681
        %2788 = vmatpush.bf16.xpose.msra.mxu0 %v2679
        %2789 = vmatpush.bf16.xpose.msra.mxu0 %v2677
        %2790 = vmatpush.bf16.xpose.msra.mxu0 %v2675
        %2791 = vmatpush.bf16.xpose.msra.mxu0 %v2673
        %2792 = vmatpush.bf16.xpose.msra.mxu0 %v2671
        %2793 = vmatmul.bf16.gmra.mxu0 %v1957
        %v2794 = vpop.f32.mrf.mxu0
        %v2795 = vadd.f32 0.0, %v2794
        %v2796 = vpop.f32.mrf.mxu0
        %v2797 = vadd.f32 0.0, %v2796
        %2798 = vmatmul.bf16.gmra.mxu0 %v1959
        %v2799 = vpop.f32.mrf.mxu0
        %v2800 = vadd.f32 0.0, %v2799
        %v2801 = vpop.f32.mrf.mxu0
        %v2802 = vadd.f32 0.0, %v2801
        %2803 = vmatmul.bf16.gmra.mxu0 %v1961
        %v2804 = vpop.f32.mrf.mxu0
        %v2805 = vadd.f32 0.0, %v2804
        %v2806 = vpop.f32.mrf.mxu0
        %v2807 = vadd.f32 0.0, %v2806
        %2808 = vmatmul.bf16.gmra.mxu0 %v1963
        %v2809 = vpop.f32.mrf.mxu0
        %v2810 = vadd.f32 0.0, %v2809
        %v2811 = vpop.f32.mrf.mxu0
        %v2812 = vadd.f32 0.0, %v2811
        %2813 = vmatmul.bf16.gmra.mxu0 %v1965
        %v2814 = vpop.f32.mrf.mxu0
        %v2815 = vadd.f32 0.0, %v2814
        %v2816 = vpop.f32.mrf.mxu0
        %v2817 = vadd.f32 0.0, %v2816
        %2818 = vmatmul.bf16.gmra.mxu0 %v1967
        %v2819 = vpop.f32.mrf.mxu0
        %v2820 = vadd.f32 0.0, %v2819
        %v2821 = vpop.f32.mrf.mxu0
        %v2822 = vadd.f32 0.0, %v2821
        %2823 = vmatmul.bf16.gmra.mxu0 %v1969
        %v2824 = vpop.f32.mrf.mxu0
        %v2825 = vadd.f32 0.0, %v2824
        %v2826 = vpop.f32.mrf.mxu0
        %v2827 = vadd.f32 0.0, %v2826
        %2828 = vmatmul.bf16.gmra.mxu0 %v1971
        %v2829 = vpop.f32.mrf.mxu0
        %v2830 = vadd.f32 0.0, %v2829
        %v2831 = vpop.f32.mrf.mxu0
        %v2832 = vadd.f32 0.0, %v2831
        %2833 = vdwg.mxu0
        %2834 = vmatpush.bf16.xpose.msra.mxu0 %v2686
        %2835 = vmatpush.bf16.xpose.msra.mxu0 %v2684
        %2836 = vmatpush.bf16.xpose.msra.mxu0 %v2682
        %2837 = vmatpush.bf16.xpose.msra.mxu0 %v2680
        %2838 = vmatpush.bf16.xpose.msra.mxu0 %v2678
        %2839 = vmatpush.bf16.xpose.msra.mxu0 %v2676
        %2840 = vmatpush.bf16.xpose.msra.mxu0 %v2674
        %2841 = vmatpush.bf16.xpose.msra.mxu0 %v2672
        %2842 = vmatmul.bf16.gmra.mxu0 %v1958
        %v2843 = vpop.f32.mrf.mxu0
        %v2844 = vadd.f32 %v2795, %v2843
        %v2845 = vpop.f32.mrf.mxu0
        %v2846 = vadd.f32 %v2797, %v2845
        %2847 = vmatmul.bf16.gmra.mxu0 %v1960
        %v2848 = vpop.f32.mrf.mxu0
        %v2849 = vadd.f32 %v2800, %v2848
        %v2850 = vpop.f32.mrf.mxu0
        %v2851 = vadd.f32 %v2802, %v2850
        %2852 = vmatmul.bf16.gmra.mxu0 %v1962
        %v2853 = vpop.f32.mrf.mxu0
        %v2854 = vadd.f32 %v2805, %v2853
        %v2855 = vpop.f32.mrf.mxu0
        %v2856 = vadd.f32 %v2807, %v2855
        %2857 = vmatmul.bf16.gmra.mxu0 %v1964
        %v2858 = vpop.f32.mrf.mxu0
        %v2859 = vadd.f32 %v2810, %v2858
        %v2860 = vpop.f32.mrf.mxu0
        %v2861 = vadd.f32 %v2812, %v2860
        %2862 = vmatmul.bf16.gmra.mxu0 %v1966
        %v2863 = vpop.f32.mrf.mxu0
        %v2864 = vadd.f32 %v2815, %v2863
        %v2865 = vpop.f32.mrf.mxu0
        %v2866 = vadd.f32 %v2817, %v2865
        %2867 = vmatmul.bf16.gmra.mxu0 %v1968
        %v2868 = vpop.f32.mrf.mxu0
        %v2869 = vadd.f32 %v2820, %v2868
        %v2870 = vpop.f32.mrf.mxu0
        %v2871 = vadd.f32 %v2822, %v2870
        %2872 = vmatmul.bf16.gmra.mxu0 %v1970
        %v2873 = vpop.f32.mrf.mxu0
        %v2874 = vadd.f32 %v2825, %v2873
        %v2875 = vpop.f32.mrf.mxu0
        %v2876 = vadd.f32 %v2827, %v2875
        %2877 = vmatmul.bf16.gmra.mxu0 %v1972
        %v2878 = vpop.f32.mrf.mxu0
        %v2879 = vadd.f32 %v2830, %v2878
        %v2880 = vpop.f32.mrf.mxu0
        %v2881 = vadd.f32 %v2832, %v2880
        %2882 = vdwg.mxu0
        %v2883 = vld [vmem:[%s6] sm:$0xf]
        %v2884 = vld [vmem:[%s6 + $0x4] sm:$0xf]
        %v2885 = vld [vmem:[%s6 + $0x8] sm:$0xf]
        %v2886 = vld [vmem:[%s6 + $0xc] sm:$0xf]
        %v2887 = vld [vmem:[%s6 + $0x10] sm:$0xf]
        %v2888 = vld [vmem:[%s6 + $0x14] sm:$0xf]
        %v2889 = vld [vmem:[%s6 + $0x18] sm:$0xf]
        %v2890 = vld [vmem:[%s6 + $0x1c] sm:$0xf]
        %v2891 = vld [vmem:[%s6 + $0x20] sm:$0xf]
        %v2892 = vld [vmem:[%s6 + $0x24] sm:$0xf]
        %v2893 = vld [vmem:[%s6 + $0x28] sm:$0xf]
        %v2894 = vld [vmem:[%s6 + $0x2c] sm:$0xf]
        %v2895 = vld [vmem:[%s6 + $0x30] sm:$0xf]
        %v2896 = vld [vmem:[%s6 + $0x34] sm:$0xf]
        %v2897 = vld [vmem:[%s6 + $0x38] sm:$0xf]
        %v2898 = vld [vmem:[%s6 + $0x3c] sm:$0xf]
        %v2899 = vpack.c.bf16 %v2748, %v2746
        %v2900 = vpack.c.bf16 %v2846, %v2844
        %v2901 = vpack.c.bf16 %v2753, %v2751
        %v2902 = vpack.c.bf16 %v2851, %v2849
        %v2903 = vpack.c.bf16 %v2758, %v2756
        %v2904 = vpack.c.bf16 %v2856, %v2854
        %v2905 = vpack.c.bf16 %v2763, %v2761
        %v2906 = vpack.c.bf16 %v2861, %v2859
        %v2907 = vpack.c.bf16 %v2768, %v2766
        %v2908 = vpack.c.bf16 %v2866, %v2864
        %v2909 = vpack.c.bf16 %v2773, %v2771
        %v2910 = vpack.c.bf16 %v2871, %v2869
        %v2911 = vpack.c.bf16 %v2778, %v2776
        %v2912 = vpack.c.bf16 %v2876, %v2874
        %v2913 = vpack.c.bf16 %v2783, %v2781
        %v2914 = vpack.c.bf16 %v2881, %v2879
        %v2915 = vld [vmem:[%s7] sm:$0xff]
        %v2916 = vld [vmem:[%s7 + $0x8] sm:$0xff]
        %v2917 = vld [vmem:[%s7 + $0x10] sm:$0xff]
        %v2918 = vld [vmem:[%s7 + $0x18] sm:$0xff]
        %v2919 = vld [vmem:[%s7 + $0x20] sm:$0xff]
        %v2920 = vld [vmem:[%s7 + $0x28] sm:$0xff]
        %v2921 = vld [vmem:[%s7 + $0x30] sm:$0xff]
        %v2922 = vld [vmem:[%s7 + $0x38] sm:$0xff]
        %v2923 = vld [vmem:[%s7 + $0x40] sm:$0xff]
        %v2924 = vld [vmem:[%s7 + $0x48] sm:$0xff]
        %v2925 = vld [vmem:[%s7 + $0x50] sm:$0xff]
        %v2926 = vld [vmem:[%s7 + $0x58] sm:$0xff]
        %v2927 = vld [vmem:[%s7 + $0x60] sm:$0xff]
        %v2928 = vld [vmem:[%s7 + $0x68] sm:$0xff]
        %v2929 = vld [vmem:[%s7 + $0x70] sm:$0xff]
        %v2930 = vld [vmem:[%s7 + $0x78] sm:$0xff]
        %2932 = vset.pattern.permute.xlu0 0
        %2933 = vperm.xlu0 %2932, %v2915
        %v2934 = vpop.permute.xlu0 %2933
        %2937 = vset.pattern.permute.xlu0 0
        %2938 = vperm.xlu0 %2937, %v2916
        %v2939 = vpop.permute.xlu0 %2938
        %2942 = vset.pattern.permute.xlu0 0
        %2943 = vperm.xlu0 %2942, %v2917
        %v2944 = vpop.permute.xlu0 %2943
        %2947 = vset.pattern.permute.xlu0 0
        %2948 = vperm.xlu0 %2947, %v2918
        %v2949 = vpop.permute.xlu0 %2948
        %2952 = vset.pattern.permute.xlu0 0
        %2953 = vperm.xlu0 %2952, %v2919
        %v2954 = vpop.permute.xlu0 %2953
        %2957 = vset.pattern.permute.xlu0 0
        %2958 = vperm.xlu0 %2957, %v2920
        %v2959 = vpop.permute.xlu0 %2958
        %2962 = vset.pattern.permute.xlu0 0
        %2963 = vperm.xlu0 %2962, %v2921
        %v2964 = vpop.permute.xlu0 %2963
        %2967 = vset.pattern.permute.xlu0 0
        %2968 = vperm.xlu0 %2967, %v2922
        %v2969 = vpop.permute.xlu0 %2968
        %2972 = vset.pattern.permute.xlu0 0
        %2973 = vperm.xlu0 %2972, %v2923
        %v2974 = vpop.permute.xlu0 %2973
        %2977 = vset.pattern.permute.xlu0 0
        %2978 = vperm.xlu0 %2977, %v2924
        %v2979 = vpop.permute.xlu0 %2978
        %2982 = vset.pattern.permute.xlu0 0
        %2983 = vperm.xlu0 %2982, %v2925
        %v2984 = vpop.permute.xlu0 %2983
        %2987 = vset.pattern.permute.xlu0 0
        %2988 = vperm.xlu0 %2987, %v2926
        %v2989 = vpop.permute.xlu0 %2988
        %2992 = vset.pattern.permute.xlu0 0
        %2993 = vperm.xlu0 %2992, %v2927
        %v2994 = vpop.permute.xlu0 %2993
        %2997 = vset.pattern.permute.xlu0 0
        %2998 = vperm.xlu0 %2997, %v2928
        %v2999 = vpop.permute.xlu0 %2998
        %3002 = vset.pattern.permute.xlu0 0
        %3003 = vperm.xlu0 %3002, %v2929
        %v3004 = vpop.permute.xlu0 %3003
        %3007 = vset.pattern.permute.xlu0 0
        %3008 = vperm.xlu0 %3007, %v2930
        %v3009 = vpop.permute.xlu0 %3008
        %v3027 = vunpack.c.l.b16 %v2883
        %v3028 = vunpack.c.l.b16 %v2884
        %v3029 = vunpack.c.l.b16 %v2885
        %v3030 = vunpack.c.l.b16 %v2886
        %v3031 = vunpack.c.l.b16 %v2887
        %v3032 = vunpack.c.l.b16 %v2888
        %v3033 = vunpack.c.l.b16 %v2889
        %v3034 = vunpack.c.l.b16 %v2890
        %v3035 = vunpack.c.l.b16 %v2891
        %v3036 = vunpack.c.l.b16 %v2892
        %v3037 = vunpack.c.l.b16 %v2893
        %v3038 = vunpack.c.l.b16 %v2894
        %v3039 = vunpack.c.l.b16 %v2895
        %v3040 = vunpack.c.l.b16 %v2896
        %v3041 = vunpack.c.l.b16 %v2897
        %v3042 = vunpack.c.l.b16 %v2898
        %v3043 = vpack.c.b16 %v3028, %v3027
        %v3044 = vpack.c.b16 %v3030, %v3029
        %v3045 = vpack.c.b16 %v3032, %v3031
        %v3046 = vpack.c.b16 %v3034, %v3033
        %v3047 = vpack.c.b16 %v3036, %v3035
        %v3048 = vpack.c.b16 %v3038, %v3037
        %v3049 = vpack.c.b16 %v3040, %v3039
        %v3050 = vpack.c.b16 %v3042, %v3041
        %3059 = vmatpush.bf16.msra.mxu0 %v2913
        %3060 = vmatpush.bf16.msra.mxu0 %v2911
        %3061 = vmatpush.bf16.msra.mxu0 %v2909
        %3062 = vmatpush.bf16.msra.mxu0 %v2907
        %3063 = vmatpush.bf16.msra.mxu0 %v2905
        %3064 = vmatpush.bf16.msra.mxu0 %v2903
        %3065 = vmatpush.bf16.msra.mxu0 %v2901
        %3066 = vmatpush.bf16.msra.mxu0 %v2899
        %3067 = vmatmul.bf16.gmra.mxu0 %v3043
        %v3068 = vpop.f32.mrf.mxu0
        %v3069 = vadd.f32 %v2934, %v3068
        %v3070 = vpop.f32.mrf.mxu0
        %v3071 = vadd.f32 %v2939, %v3070
        %3072 = vmatmul.bf16.gmra.mxu0 %v3044
        %v3073 = vpop.f32.mrf.mxu0
        %v3074 = vadd.f32 %v2944, %v3073
        %v3075 = vpop.f32.mrf.mxu0
        %v3076 = vadd.f32 %v2949, %v3075
        %3077 = vmatmul.bf16.gmra.mxu0 %v3045
        %v3078 = vpop.f32.mrf.mxu0
        %v3079 = vadd.f32 %v2954, %v3078
        %v3080 = vpop.f32.mrf.mxu0
        %v3081 = vadd.f32 %v2959, %v3080
        %3082 = vmatmul.bf16.gmra.mxu0 %v3046
        %v3083 = vpop.f32.mrf.mxu0
        %v3084 = vadd.f32 %v2964, %v3083
        %v3085 = vpop.f32.mrf.mxu0
        %v3086 = vadd.f32 %v2969, %v3085
        %3087 = vmatmul.bf16.gmra.mxu0 %v3047
        %v3088 = vpop.f32.mrf.mxu0
        %v3089 = vadd.f32 %v2974, %v3088
        %v3090 = vpop.f32.mrf.mxu0
        %v3091 = vadd.f32 %v2979, %v3090
        %3092 = vmatmul.bf16.gmra.mxu0 %v3048
        %v3093 = vpop.f32.mrf.mxu0
        %v3094 = vadd.f32 %v2984, %v3093
        %v3095 = vpop.f32.mrf.mxu0
        %v3096 = vadd.f32 %v2989, %v3095
        %3097 = vmatmul.bf16.gmra.mxu0 %v3049
        %v3098 = vpop.f32.mrf.mxu0
        %v3099 = vadd.f32 %v2994, %v3098
        %v3100 = vpop.f32.mrf.mxu0
        %v3101 = vadd.f32 %v2999, %v3100
        %3102 = vmatmul.bf16.gmra.mxu0 %v3050
        %v3103 = vpop.f32.mrf.mxu0
        %v3104 = vadd.f32 %v3004, %v3103
        %v3105 = vpop.f32.mrf.mxu0
        %v3106 = vadd.f32 %v3009, %v3105
        %3107 = vdwg.mxu0
        %3108 = vmatpush.bf16.msra.mxu0 %v2914
        %3109 = vmatpush.bf16.msra.mxu0 %v2912
        %3110 = vmatpush.bf16.msra.mxu0 %v2910
        %3111 = vmatpush.bf16.msra.mxu0 %v2908
        %3112 = vmatpush.bf16.msra.mxu0 %v2906
        %3113 = vmatpush.bf16.msra.mxu0 %v2904
        %3114 = vmatpush.bf16.msra.mxu0 %v2902
        %3115 = vmatpush.bf16.msra.mxu0 %v2900
        %3116 = vmatmul.bf16.gmra.mxu0 %v3043
        %v3117 = vpop.f32.mrf.mxu0
        %v3118 = vadd.f32 %v2934, %v3117
        %v3119 = vpop.f32.mrf.mxu0
        %v3120 = vadd.f32 %v2939, %v3119
        %3121 = vmatmul.bf16.gmra.mxu0 %v3044
        %v3122 = vpop.f32.mrf.mxu0
        %v3123 = vadd.f32 %v2944, %v3122
        %v3124 = vpop.f32.mrf.mxu0
        %v3125 = vadd.f32 %v2949, %v3124
        %3126 = vmatmul.bf16.gmra.mxu0 %v3045
        %v3127 = vpop.f32.mrf.mxu0
        %v3128 = vadd.f32 %v2954, %v3127
        %v3129 = vpop.f32.mrf.mxu0
        %v3130 = vadd.f32 %v2959, %v3129
        %3131 = vmatmul.bf16.gmra.mxu0 %v3046
        %v3132 = vpop.f32.mrf.mxu0
        %v3133 = vadd.f32 %v2964, %v3132
        %v3134 = vpop.f32.mrf.mxu0
        %v3135 = vadd.f32 %v2969, %v3134
        %3136 = vmatmul.bf16.gmra.mxu0 %v3047
        %v3137 = vpop.f32.mrf.mxu0
        %v3138 = vadd.f32 %v2974, %v3137
        %v3139 = vpop.f32.mrf.mxu0
        %v3140 = vadd.f32 %v2979, %v3139
        %3141 = vmatmul.bf16.gmra.mxu0 %v3048
        %v3142 = vpop.f32.mrf.mxu0
        %v3143 = vadd.f32 %v2984, %v3142
        %v3144 = vpop.f32.mrf.mxu0
        %v3145 = vadd.f32 %v2989, %v3144
        %3146 = vmatmul.bf16.gmra.mxu0 %v3049
        %v3147 = vpop.f32.mrf.mxu0
        %v3148 = vadd.f32 %v2994, %v3147
        %v3149 = vpop.f32.mrf.mxu0
        %v3150 = vadd.f32 %v2999, %v3149
        %3151 = vmatmul.bf16.gmra.mxu0 %v3050
        %v3152 = vpop.f32.mrf.mxu0
        %v3153 = vadd.f32 %v3004, %v3152
        %v3154 = vpop.f32.mrf.mxu0
        %v3155 = vadd.f32 %v3009, %v3154
        %3156 = vdwg.mxu0
        %v3157 = vadd.f32 %v321, %v3069
        %v3158 = vadd.f32 %v322, %v3118
        %v3159 = vadd.f32 %v323, %v3071
        %v3160 = vadd.f32 %v324, %v3120
        %v3161 = vadd.f32 %v325, %v3074
        %v3162 = vadd.f32 %v326, %v3123
        %v3163 = vadd.f32 %v327, %v3076
        %v3164 = vadd.f32 %v328, %v3125
        %v3165 = vadd.f32 %v329, %v3079
        %v3166 = vadd.f32 %v330, %v3128
        %v3167 = vadd.f32 %v331, %v3081
        %v3168 = vadd.f32 %v332, %v3130
        %v3169 = vadd.f32 %v333, %v3084
        %v3170 = vadd.f32 %v334, %v3133
        %v3171 = vadd.f32 %v335, %v3086
        %v3172 = vadd.f32 %v336, %v3135
        %v3173 = vadd.f32 %v337, %v3089
        %v3174 = vadd.f32 %v338, %v3138
        %v3175 = vadd.f32 %v339, %v3091
        %v3176 = vadd.f32 %v340, %v3140
        %v3177 = vadd.f32 %v341, %v3094
        %v3178 = vadd.f32 %v342, %v3143
        %v3179 = vadd.f32 %v343, %v3096
        %v3180 = vadd.f32 %v344, %v3145
        %v3181 = vadd.f32 %v345, %v3099
        %v3182 = vadd.f32 %v346, %v3148
        %v3183 = vadd.f32 %v347, %v3101
        %v3184 = vadd.f32 %v348, %v3150
        %v3185 = vadd.f32 %v349, %v3104
        %v3186 = vadd.f32 %v350, %v3153
        %v3187 = vadd.f32 %v351, %v3106
        %v3188 = vadd.f32 %v352, %v3155
        %3189 = vst [vmem:[%s315] sm:$0xff] %v3157
        %3190 = vst [vmem:[%s315 + $0x8] sm:$0xff] %v3158
        %3191 = vst [vmem:[%s315 + $0x10] sm:$0xff] %v3159
        %3192 = vst [vmem:[%s315 + $0x18] sm:$0xff] %v3160
        %3193 = vst [vmem:[%s315 + $0x20] sm:$0xff] %v3161
        %3194 = vst [vmem:[%s315 + $0x28] sm:$0xff] %v3162
        %3195 = vst [vmem:[%s315 + $0x30] sm:$0xff] %v3163
        %3196 = vst [vmem:[%s315 + $0x38] sm:$0xff] %v3164
        %3197 = vst [vmem:[%s315 + $0x40] sm:$0xff] %v3165
        %3198 = vst [vmem:[%s315 + $0x48] sm:$0xff] %v3166
        %3199 = vst [vmem:[%s315 + $0x50] sm:$0xff] %v3167
        %3200 = vst [vmem:[%s315 + $0x58] sm:$0xff] %v3168
        %3201 = vst [vmem:[%s315 + $0x60] sm:$0xff] %v3169
        %3202 = vst [vmem:[%s315 + $0x68] sm:$0xff] %v3170
        %3203 = vst [vmem:[%s315 + $0x70] sm:$0xff] %v3171
        %3204 = vst [vmem:[%s315 + $0x78] sm:$0xff] %v3172
        %3205 = vst [vmem:[%s315 + $0x80] sm:$0xff] %v3173
        %3206 = vst [vmem:[%s315 + $0x88] sm:$0xff] %v3174
        %3207 = vst [vmem:[%s315 + $0x90] sm:$0xff] %v3175
        %3208 = vst [vmem:[%s315 + $0x98] sm:$0xff] %v3176
        %3209 = vst [vmem:[%s315 + $0xa0] sm:$0xff] %v3177
        %3210 = vst [vmem:[%s315 + $0xa8] sm:$0xff] %v3178
        %3211 = vst [vmem:[%s315 + $0xb0] sm:$0xff] %v3179
        %3212 = vst [vmem:[%s315 + $0xb8] sm:$0xff] %v3180
        %3213 = vst [vmem:[%s315 + $0xc0] sm:$0xff] %v3181
        %3214 = vst [vmem:[%s315 + $0xc8] sm:$0xff] %v3182
        %3215 = vst [vmem:[%s315 + $0xd0] sm:$0xff] %v3183
        %3216 = vst [vmem:[%s315 + $0xd8] sm:$0xff] %v3184
        %3217 = vst [vmem:[%s315 + $0xe0] sm:$0xff] %v3185
        %3218 = vst [vmem:[%s315 + $0xe8] sm:$0xff] %v3186
        %3219 = vst [vmem:[%s315 + $0xf0] sm:$0xff] %v3187
        %3220 = vst [vmem:[%s315 + $0xf8] sm:$0xff] %v3188
        %s3221 = sand.u32 %s204, 1
        %s3222 = scalar_lea.sflag [#allocation4], %s3221
        %s3223 = sand.u32 %s204, 1
        %s3224 = smul.addr %s3223, 256
        %s3225 = scalar_lea.vmem [#allocation5], %s3224
        // Predicated region
        $region57: #{tpu_custom_call.1} parent=51 // pred_check
          %p3226 = pneg %p214
        $region58: #{tpu_custom_call.1} parent=51 // pred_check_branch
          %3228 = sbr.rel (%p3226) target = $region60
        $region59: #{tpu_custom_call.1} parent=51 // pred_region
          %3230 = vsyncadd %s3222, 0
          %s3231 = smul.addr %s23, 32
          %s3232 = smul.addr %s3231, 8
          %s3233 = scalar_lea.hbm %s8, %s3232
          %s3234 = sshll.u32 %s3225, 4
          %s3235 = int_to_ptr.vmem [resolvable:$true] %s3234
          %s3236 = sshll.u32 %s3233, 4
          %s3237 = int_to_ptr.hbm [resolvable:$true] %s3236
          %3242 = dma.vmem_to_hbm [thread:$0]  %s3235, 4096, %s3237, %s3222, 256, 256, 16
        $region60: #{tpu_custom_call.1} parent=51 // pred_fallthru
          _
      $region52: #{tpu_custom_call.1} parent=5 // pred_fallthru
        _
      %p3243 = scmp.le.s32.totalorder 2, %s18
      // Predicated region
      $region61: #{tpu_custom_call.1} parent=5 // pred_check
        %p3244 = pneg %p3243
      $region62: #{tpu_custom_call.1} parent=5 // pred_check_branch
        %3246 = sbr.rel (%p3244) target = $region64
      $region63: #{tpu_custom_call.1} parent=5 // pred_region
        %s3247 = ssub.s32 %s18, 2
        // Predicated region
        $region65: #{tpu_custom_call.1} parent=63 // pred_check
          %p3248 = pneg %p220
        $region66: #{tpu_custom_call.1} parent=63 // pred_check_branch
          %3250 = sbr.rel (%p3248) target = $region68
        $region67: #{tpu_custom_call.1} parent=63 // pred_region
          %s3251 = sand.u32 %s205, 1
          %s3252 = scalar_lea.sflag [#allocation4], %s3251
          %s3253 = sand.u32 %s205, 1
          %s3254 = smul.addr %s3253, 256
          %s3255 = scalar_lea.vmem [#allocation5], %s3254
          %3257 = dma.done %s3252, 4096
        $region68: #{tpu_custom_call.1} parent=63 // pred_fallthru
          _
      $region64: #{tpu_custom_call.1} parent=5 // pred_fallthru
        _
    $region6: #{tpu_custom_call.1} parent=1 // loop_footer
      %s22 = sadd.s32 1, %s18
    $region7: #{tpu_custom_call.1} parent=1 // loop_footer_branch
      %17 = sbr.rel target = $region3
    $region8: #{tpu_custom_call.1} parent=1 // loop_exit
      _
    %3258 = vsyncpa [#allocation3], 1
    %s3259 = scalar_lea.sflag [#allocation3], 1
    %3260 = vsyncpa %s3259, 1
    %3261 = vsyncpa [#allocation4], 1
    %s3262 = scalar_lea.sflag [#allocation4], 1
    %3263 = vsyncpa %s3262, 1

</llo_original>
